<compile_context>
chip_gen: v5e
topology: v5e:2x2
jax: 0.10.0
libtpu: 0.0.40
codegen_flags: <defaults>
</compile_context>

<pallas_src>
import functools

import jax
import jax.numpy as jnp
from jax import lax
from jax.experimental import pallas as pl
from jax.experimental.pallas import tpu as pltpu

EPS = 1e-5


# ---------------------------------------------------------------------------
# Kernels
# ---------------------------------------------------------------------------
def _conv1_kernel(x_ref, w1_ref, h1_ref, st_ref, *, total_rows):
    """1x1 conv (row-tiled matmul) + per-tile BN1 statistics (sum, sum-of-sq)."""
    h = jnp.dot(x_ref[...], w1_ref[...], preferred_element_type=jnp.float32)
    h1_ref[...] = h.astype(h1_ref.dtype)

    tile_rows = x_ref.shape[0]
    if total_rows % tile_rows:                      # static: tail-masked grid
        row = pl.program_id(0) * tile_rows + lax.broadcasted_iota(
            jnp.int32, h.shape, 0)
        h = jnp.where(row < total_rows, h, 0.0)

    s = jnp.sum(h, axis=0, keepdims=True)
    ss = jnp.sum(h * h, axis=0, keepdims=True)
    st_ref[...] = jnp.concatenate([s, ss], axis=0)[None]      # one store


def _conv2_kernel(h1_ref, s1_ref, b1_ref, w2_ref, h2_ref, st_ref, cat_ref):
    """Folded BN1 affine + ReLU + 3x3 conv (pad 1) on a TH-row tile of one image.

    The 3x3 conv runs as 3 matmuls with contraction K = 3*C: the three dx taps
    for a given dy sit side by side in the channel dim of the scratch.  The
    scratch is written with a single dense store; halo rows/columns are zeroed
    in-register (row-index select / zero-column concat), not with masked stores.
    """
    _, Ho, Wo, C = h1_ref.shape
    TH = h2_ref.shape[1]
    cdt = cat_ref.dtype

    i = pl.program_id(1)
    row0 = i * TH
    if TH % 8 == 0:
        row0 = pl.multiple_of(row0, TH)
    top = jnp.maximum(row0 - 1, 0)                 # clamped halo rows (masked
    bot = jnp.minimum(row0 + TH, Ho - 1)           # to zero below if off-image)

    blk = jnp.concatenate(
        [h1_ref[0, pl.ds(top, 1), :, :],
         h1_ref[0, pl.ds(row0, TH), :, :],
         h1_ref[0, pl.ds(bot, 1), :, :]], axis=0).astype(jnp.float32)

    # BN1 affine (batch stats already folded into scale/shift) + ReLU, in f32;
    # zero the out-of-image halo rows with a row-index select.
    h = jnp.maximum(blk * s1_ref[...].reshape(1, 1, C)
                    + b1_ref[...].reshape(1, 1, C), 0.0)
    gy = row0 - 1 + lax.broadcasted_iota(jnp.int32, h.shape, 0)
    h = jnp.where((gy >= 0) & (gy < Ho), h, 0.0).astype(cdt)

    # dx taps side by side in the channel dim; single full-width store.
    zc = jnp.zeros((TH + 2, 1, C), cdt)
    left = jnp.concatenate([zc, h[:, :Wo - 1, :]], axis=1)      # x-1 tap
    right = jnp.concatenate([h[:, 1:, :], zc], axis=1)          # x+1 tap
    cat_ref[...] = jnp.concatenate([left, h, right], axis=-1)

    acc = None
    for dy in range(3):
        a = cat_ref[dy:dy + TH].reshape(TH * Wo, 3 * C)
        prt = jnp.dot(a, w2_ref[dy], preferred_element_type=jnp.float32)
        acc = prt if acc is None else acc + prt

    h2_ref[...] = acc.reshape(1, TH, Wo, C).astype(h2_ref.dtype)
    s = jnp.sum(acc, axis=0, keepdims=True)
    ss = jnp.sum(acc * acc, axis=0, keepdims=True)
    st_ref[...] = jnp.concatenate([s, ss], axis=0)[None, None]  # one store


def _conv3_kernel(h2_ref, s2_ref, b2_ref, w3_ref, h3_ref, st_ref, *, total_rows):
    """Folded BN2 affine + ReLU + 1x1 conv + per-tile BN3 statistics."""
    h = jnp.maximum(h2_ref[...].astype(jnp.float32) * s2_ref[...] + b2_ref[...],
                    0.0)
    y = jnp.dot(h.astype(w3_ref.dtype), w3_ref[...],
                preferred_element_type=jnp.float32)
    h3_ref[...] = y.astype(h3_ref.dtype)

    tile_rows = h2_ref.shape[0]
    if total_rows % tile_rows:                      # static: tail-masked grid
        row = pl.program_id(0) * tile_rows + lax.broadcasted_iota(
            jnp.int32, y.shape, 0)
        y = jnp.where(row < total_rows, y, 0.0)

    s = jnp.sum(y, axis=0, keepdims=True)
    ss = jnp.sum(y * y, axis=0, keepdims=True)
    st_ref[...] = jnp.concatenate([s, ss], axis=0)[None]        # one store


def _bn3_add_relu_kernel(h3_ref, sc_ref, s3_ref, b3_ref, out_ref):
    """Folded BN3 affine + identity-padded shortcut add + ReLU.

    The shortcut's channel zero-pad is done in-register (concat zeros) so the
    output is written with a single full-width store.
    """
    h = h3_ref[...].astype(jnp.float32) * s3_ref[...] + b3_ref[...]
    s = sc_ref[...].astype(jnp.float32)
    cin = s.shape[1]
    c = h.shape[1]
    if cin < c:
        s = jnp.concatenate(
            [s, jnp.zeros((s.shape[0], c - cin), jnp.float32)], axis=1)
    out_ref[...] = jnp.maximum(h + s, 0.0)


# ---------------------------------------------------------------------------
# Host-side glue
# ---------------------------------------------------------------------------
def _fold_bn(stats, count, gamma, beta):
    """Per-tile (sum, sumsq) partials -> fused per-channel BN scale/shift."""
    st = stats.reshape(-1, 2, stats.shape[-1]).astype(jnp.float32)
    s = jnp.sum(st[:, 0, :], axis=0)
    ss = jnp.sum(st[:, 1, :], axis=0)
    mean = s / count
    var = jnp.maximum(ss / count - mean * mean, 0.0)   # one-pass variance (f32)
    scale = gamma * lax.rsqrt(var + EPS)
    shift = beta - mean * scale
    return (scale.reshape(1, -1).astype(jnp.float32),
            shift.reshape(1, -1).astype(jnp.float32))


def _pick_tile_m(m, target):
    """Row tile: divisor of m near target if one exists, else target (cdiv grid
    with a statically-generated tail mask inside the kernels)."""
    target = max(8, target - target % 8)
    if m <= target:
        return m
    c = target
    while c >= max(8, target // 2):
        if m % c == 0:
            return c
        c -= 8
    return target


def _pick_tile_h(h, target):
    """Largest divisor of h that is <= target (>= 1)."""
    t = max(1, min(h, target))
    while h % t:
        t -= 1
    return t


def init_params(key, in_channels, out_channels):
    k1, k2, k3, k4, k5 = jax.random.split(key, 5)
    return {
        # w1: (Cin, Cout), w2: (ky, kx, Cin2, Cout) [HWIO], w3: (Cout, Cout)
        "w1": 0.1 * jax.random.normal(k1, (in_channels, out_channels), jnp.float32),
        "w2": 0.1 * jax.random.normal(k2, (3, 3, out_channels, out_channels), jnp.float32),
        "w3": 0.1 * jax.random.normal(k3, (out_channels, out_channels), jnp.float32),
        "g1": 1.0 + 0.1 * jax.random.normal(k4, (out_channels,), jnp.float32),
        "b1": 0.1 * jax.random.normal(k5, (out_channels,), jnp.float32),
        "g2": jnp.ones((out_channels,), jnp.float32),
        "b2": jnp.zeros((out_channels,), jnp.float32),
        "g3": 1.0 + 0.05 * jnp.arange(out_channels, dtype=jnp.float32),
        "b3": 0.01 * jnp.arange(out_channels, dtype=jnp.float32),
    }


def bottleneck_forward(x_nchw, p, *, stride=1, down_sample=False,
                       use_bf16=True, tile_m=512, tile_h=None,
                       vmem_limit_bytes=None):
    """Pallas forward.  x_nchw: (N, Cin, H, W) f32 -> (N, Cout, Ho, Wo) f32."""
    cdt = jnp.bfloat16 if use_bf16 else jnp.float32
    isz = jnp.dtype(cdt).itemsize
    x = jnp.transpose(x_nchw, (0, 2, 3, 1))                      # NHWC
    N, H, W, Cin = x.shape
    C = p["w1"].shape[1]

    if not down_sample and (stride != 1 or Cin != C):
        raise ValueError("down_sample=False requires stride == 1 and "
                         "Cin == Cout (same constraint as the PyTorch module).")

    # TODO(synk): fold the stride-s spatial subsample into the conv1 DMA (a
    # strided / Element index_map); it currently fuses with the bf16 cast but
    # still costs one HBM round trip of x_s before stage 1.
    x_s = x[:, ::stride, ::stride, :].astype(cdt)                # slice + cast
    _, Ho, Wo, _ = x_s.shape
    M0 = N * Ho * Wo
    TILE = _pick_tile_m(M0, tile_m)
    MT = pl.cdiv(M0, TILE)
    TH = _pick_tile_h(Ho, tile_h if tile_h is not None
                      else max(1, 512 // max(Wo, 1)))
    HT = Ho // TH

    x2 = x_s.reshape(M0, Cin)

    # Weights pre-cast to the MXU operand dtype; resident across the grid.
    w1c = p["w1"].astype(cdt)
    w2r = p["w2"].reshape(3, 3 * C, C).astype(cdt)   # rows ordered (dx, cin)
    w3c = p["w3"].astype(cdt)

    def cparams(sem):
        return pltpu.CompilerParams(dimension_semantics=sem,
                                    vmem_limit_bytes=vmem_limit_bytes)

    row_spec_in = pl.BlockSpec((TILE, Cin), lambda i: (i, 0))
    row_spec_c = pl.BlockSpec((TILE, C), lambda i: (i, 0))
    chan_spec = pl.BlockSpec((1, C), lambda i: (0, 0))
    chan_spec2 = pl.BlockSpec((1, C), lambda n, i: (0, 0))
    stat_spec = pl.BlockSpec((1, 2, C), lambda i: (i, 0, 0))

    # ---- stage 1: conv1 (1x1, row-tiled) + partial BN1 statistics ----------
    h1, st1 = pl.pallas_call(
        functools.partial(_conv1_kernel, total_rows=M0),
        grid=(MT,),
        in_specs=[row_spec_in, pl.BlockSpec((Cin, C), lambda i: (0, 0))],
        out_specs=[row_spec_c, stat_spec],
        out_shape=(jax.ShapeDtypeStruct((M0, C), cdt),
                   jax.ShapeDtypeStruct((MT, 2, C), jnp.float32)),
        compiler_params=cparams(("parallel",)),
        cost_estimate=pl.CostEstimate(
            flops=2 * M0 * Cin * C, transcendentals=0,
            bytes_accessed=int(M0 * Cin * isz + Cin * C * isz + M0 * C * isz)),
    )(x2, w1c)
    s1, b1 = _fold_bn(st1, float(M0), p["g1"], p["b1"])

    # ---- stage 2: BN1 + ReLU + conv2 (3x3, row-tiled per image) + BN2 stats -
    h2, st2 = pl.pallas_call(
        _conv2_kernel,
        grid=(N, HT),
        in_specs=[pl.BlockSpec((1, Ho, Wo, C), lambda n, i: (n, 0, 0, 0)),
                  chan_spec2, chan_spec2,
                  pl.BlockSpec((3, 3 * C, C), lambda n, i: (0, 0, 0))],
        out_specs=[pl.BlockSpec((1, TH, Wo, C), lambda n, i: (n, i, 0, 0)),
                   pl.BlockSpec((1, 1, 2, C), lambda n, i: (n, i, 0, 0))],
        out_shape=(jax.ShapeDtypeStruct((N, Ho, Wo, C), cdt),
                   jax.ShapeDtypeStruct((N, HT, 2, C), jnp.float32)),
        scratch_shapes=[pltpu.VMEM((TH + 2, Wo, 3 * C), cdt)],
        compiler_params=cparams(("parallel", "parallel")),
        cost_estimate=pl.CostEstimate(
            flops=18 * M0 * C * C, transcendentals=0,
            bytes_accessed=int(2 * M0 * C * isz + 9 * C * C * isz)),
    )(h1.reshape(N, Ho, Wo, C), s1, b1, w2r)
    s2, b2 = _fold_bn(st2, float(M0), p["g2"], p["b2"])

    # ---- stage 3: BN2 + ReLU + conv3 (1x1, row-tiled) + partial BN3 stats --
    h3, st3 = pl.pallas_call(
        functools.partial(_conv3_kernel, total_rows=M0),
        grid=(MT,),
        in_specs=[row_spec_c, chan_spec, chan_spec,
                  pl.BlockSpec((C, C), lambda i: (0, 0))],
        out_specs=[row_spec_c, stat_spec],
        out_shape=(jax.ShapeDtypeStruct((M0, C), cdt),
                   jax.ShapeDtypeStruct((MT, 2, C), jnp.float32)),
        compiler_params=cparams(("parallel",)),
        cost_estimate=pl.CostEstimate(
            flops=2 * M0 * C * C, transcendentals=0,
            bytes_accessed=int(2 * M0 * C * isz + C * C * isz)),
    )(h2.reshape(M0, C), s2, b2, w3c)
    s3, b3 = _fold_bn(st3, float(M0), p["g3"], p["b3"])

    # ---- stage 4: BN3 + shortcut (channel zero-pad in-kernel) + ReLU -------
    # Shortcut == stride-subsampled input (IdentityPadding's MaxPool(1, s));
    # the channel zero-pad happens inside the kernel, no padded HBM array.
    out2d = pl.pallas_call(
        _bn3_add_relu_kernel,
        grid=(MT,),
        in_specs=[row_spec_c, row_spec_in, chan_spec, chan_spec],
        out_specs=row_spec_c,
        out_shape=jax.ShapeDtypeStruct((M0, C), jnp.float32),
        compiler_params=cparams(("parallel",)),
        cost_estimate=pl.CostEstimate(
            flops=3 * M0 * C, transcendentals=0,
            bytes_accessed=int(M0 * C * isz + M0 * Cin * isz + M0 * C * 4)),
    )(h3, x2, s3, b3)

    out = out2d.reshape(N, Ho, Wo, C)
    return jnp.transpose(out, (0, 3, 1, 2))   # back to NCHW


bottleneck_forward_jit = jax.jit(
    bottleneck_forward,
    static_argnames=("stride", "down_sample", "use_bf16", "tile_m", "tile_h",
                     "vmem_limit_bytes"))


# ---------------------------------------------------------------------------
# Pure-JAX reference (mirrors the PyTorch forward, training-mode BN, f32)
# ---------------------------------------------------------------------------
def reference_forward(x_nchw, p, *, stride=1, down_sample=False):
    x = jnp.transpose(x_nchw, (0, 2, 3, 1)).astype(jnp.float32)
    Cin = x.shape[-1]
    Cout = p["w1"].shape[1]
    dn = ("NHWC", "HWIO", "NHWC")

    def bn(h, g, b):
        mean = jnp.mean(h, axis=(0, 1, 2), keepdims=True)
        var = jnp.mean((h - mean) ** 2, axis=(0, 1, 2), keepdims=True)
        return ((h - mean) / jnp.sqrt(var + EPS) * g.reshape(1, 1, 1, -1)
                + b.reshape(1, 1, 1, -1))

    h = lax.conv_general_dilated(x, p["w1"].reshape(1, 1, Cin, Cout),
                                 (stride, stride), "VALID", dimension_numbers=dn)
    h = jax.nn.relu(bn(h, p["g1"], p["b1"]))
    h = lax.conv_general_dilated(h, p["w2"], (1, 1), ((1, 1), (1, 1)),
                                 dimension_numbers=dn)
    h = jax.nn.relu(bn(h, p["g2"], p["b2"]))
    h = lax.conv_general_dilated(h, p["w3"].reshape(1, 1, Cout, Cout),
                                 (1, 1), "VALID", dimension_numbers=dn)
    h = bn(h, p["g3"], p["b3"])

    if down_sample:
        sc = jnp.pad(x, ((0, 0), (0, 0), (0, 0), (0, Cout - Cin)))
        sc = sc[:, ::stride, ::stride, :]
    else:
        sc = x
    h = jax.nn.relu(h + sc)
    return jnp.transpose(h, (0, 3, 1, 2))


if __name__ == "__main__":
    key = jax.random.PRNGKey(0)
    kx_a, kp_a, kx_b, kp_b = jax.random.split(key, 4)

    # Down-sample block: Cin=4 -> Cout=8 (channel-padding shortcut).
    x_a = jax.random.normal(kx_a, (2, 4, 16, 16), jnp.float32)
    p_a = init_params(kp_a, 4, 8)
    # Identity block: Cin = Cout = 8, stride 1 (plain residual shortcut).
    x_b = jax.random.normal(kx_b, (2, 8, 16, 16), jnp.float32)
    p_b = init_params(kp_b, 8, 8)

    cases = [
        ("down_s1", x_a, p_a, dict(stride=1, down_sample=True, tile_m=128, tile_h=4)),
        ("down_s2", x_a, p_a, dict(stride=2, down_sample=True)),
        ("ident_s1", x_b, p_b, dict(stride=1, down_sample=False, tile_m=256, tile_h=8)),
    ]

    ok = True
    for name, x, p, kw in cases:
        ref = reference_forward(x, p, stride=kw["stride"],
                                down_sample=kw["down_sample"])
        for use_bf16, tol in ((False, 2e-3), (True, 5e-2)):
            out = bottleneck_forward_jit(x, p, use_bf16=use_bf16, **kw)
            out = jax.block_until_ready(out)
            if not bool(jnp.allclose(out, ref, rtol=tol, atol=tol)):
                ok = False
                err = float(jnp.max(jnp.abs(out - ref)))
                print(f"mismatch [{name}, bf16={use_bf16}]: max abs err = {err}")

    if ok:
        print("KERNEL_OK")
</pallas_src>

<mosaic_0001>
module attributes {stable_mosaic.version = 11 : i64} {
  func.func @_conv1_kernel(%arg0: i32, %arg1: memref<128x4xf32, #tpu.memory_space<vmem>>, %arg2: memref<4x8xf32, #tpu.memory_space<vmem>>, %arg3: memref<128x8xf32, #tpu.memory_space<vmem>>, %arg4: memref<1x2x8xf32, #tpu.memory_space<vmem>>) attributes {dimension_semantics = [#tpu.dimension_semantics<parallel>], iteration_bounds = array<i64: 4>, scalar_prefetch = 0 : i64, scratch_operands = 0 : i64, tpu.core_type = #tpu.core_type<tc>, window_params = [{transform_indices = @transform_0, window_bounds = array<i64: 128, 4>}, {pipeline_mode = #tpu.pipeline_mode<synchronous>, transform_indices = @transform_1, window_bounds = array<i64: 4, 8>}, {transform_indices = @transform_2, window_bounds = array<i64: 128, 8>}, {transform_indices = @transform_3, window_bounds = array<i64: 1, 2, 8>}]} {
    %c0 = arith.constant 0 : index
    %c0_0 = arith.constant 0 : index
    %0 = vector.load %arg1[%c0, %c0_0] : memref<128x4xf32, #tpu.memory_space<vmem>>, vector<128x4xf32>
    %c0_1 = arith.constant 0 : index
    %c0_2 = arith.constant 0 : index
    %1 = vector.load %arg2[%c0_1, %c0_2] : memref<4x8xf32, #tpu.memory_space<vmem>>, vector<4x8xf32>
    %cst = arith.constant dense<0.000000e+00> : vector<128x8xf32>
    %2 = tpu.matmul %0, %1, %cst {dimension_numbers = #tpu.dot_dimension_numbers<[1], [0], [0], [1], [0, 0, 1, 1], [], []>} : vector<128x4xf32>, vector<4x8xf32>, vector<128x8xf32> -> vector<128x8xf32>
    %c0_3 = arith.constant 0 : index
    %c0_4 = arith.constant 0 : index
    %3 = vector.load %arg3[%c0_3, %c0_4] : memref<128x8xf32, #tpu.memory_space<vmem>>, vector<128x8xf32>
    tpu.vector_store %arg3[%c0_3, %c0_4], %2 {strides = array<i32>} : memref<128x8xf32, #tpu.memory_space<vmem>>, vector<128x8xf32>,
    %cst_5 = arith.constant dense<0.000000e+00> : vector<8xf32>
    %4 = vector.multi_reduction <add>, %2, %cst_5 [0] : vector<128x8xf32> to vector<8xf32>
    %5 = vector.shape_cast %4 : vector<8xf32> to vector<1x8xf32>
    %6 = arith.mulf %2, %2 : vector<128x8xf32>
    %cst_6 = arith.constant dense<0.000000e+00> : vector<8xf32>
    %7 = vector.multi_reduction <add>, %6, %cst_6 [0] : vector<128x8xf32> to vector<8xf32>
    %8 = vector.shape_cast %7 : vector<8xf32> to vector<1x8xf32>
    %9 = tpu.concatenate %5, %8 in 0 : vector<1x8xf32>, vector<1x8xf32> -> vector<2x8xf32>
    %10 = vector.shape_cast %9 : vector<2x8xf32> to vector<1x2x8xf32>
    %c0_7 = arith.constant 0 : index
    %c0_8 = arith.constant 0 : index
    %c0_9 = arith.constant 0 : index
    %11 = vector.load %arg4[%c0_7, %c0_8, %c0_9] : memref<1x2x8xf32, #tpu.memory_space<vmem>>, vector<1x2x8xf32>
    tpu.vector_store %arg4[%c0_7, %c0_8, %c0_9], %10 {strides = array<i32>} : memref<1x2x8xf32, #tpu.memory_space<vmem>>, vector<1x2x8xf32>,
    return
  }
  func.func @transform_0(%arg0: i32) -> (i32, i32) {
    %c0_i32 = arith.constant 0 : i32
    %c0_i32_0 = arith.constant 0 : i32
    return %arg0, %c0_i32 : i32, i32
  }
  func.func @transform_1(%arg0: i32) -> (i32, i32) {
    %c0_i32 = arith.constant 0 : i32
    %c0_i32_0 = arith.constant 0 : i32
    %c0_i32_1 = arith.constant 0 : i32
    return %c0_i32, %c0_i32_0 : i32, i32
  }
  func.func @transform_2(%arg0: i32) -> (i32, i32) {
    %c0_i32 = arith.constant 0 : i32
    %c0_i32_0 = arith.constant 0 : i32
    return %arg0, %c0_i32 : i32, i32
  }
  func.func @transform_3(%arg0: i32) -> (i32, i32, i32) {
    %c0_i32 = arith.constant 0 : i32
    %c0_i32_0 = arith.constant 0 : i32
    %c0_i32_1 = arith.constant 0 : i32
    return %arg0, %c0_i32, %c0_i32_0 : i32, i32, i32
  }
}

module attributes {stable_mosaic.version = 11 : i64} {
  func.func @_conv3_kernel(%arg0: i32, %arg1: memref<128x8xf32, #tpu.memory_space<vmem>>, %arg2: memref<1x8xf32, #tpu.memory_space<vmem>>, %arg3: memref<1x8xf32, #tpu.memory_space<vmem>>, %arg4: memref<8x8xf32, #tpu.memory_space<vmem>>, %arg5: memref<128x8xf32, #tpu.memory_space<vmem>>, %arg6: memref<1x2x8xf32, #tpu.memory_space<vmem>>) attributes {dimension_semantics = [#tpu.dimension_semantics<parallel>], iteration_bounds = array<i64: 4>, scalar_prefetch = 0 : i64, scratch_operands = 0 : i64, tpu.core_type = #tpu.core_type<tc>, window_params = [{transform_indices = @transform_0, window_bounds = array<i64: 128, 8>}, {pipeline_mode = #tpu.pipeline_mode<synchronous>, transform_indices = @transform_1, window_bounds = array<i64: 1, 8>}, {pipeline_mode = #tpu.pipeline_mode<synchronous>, transform_indices = @transform_2, window_bounds = array<i64: 1, 8>}, {pipeline_mode = #tpu.pipeline_mode<synchronous>, transform_indices = @transform_3, window_bounds = array<i64: 8, 8>}, {transform_indices = @transform_4, window_bounds = array<i64: 128, 8>}, {transform_indices = @transform_5, window_bounds = array<i64: 1, 2, 8>}]} {
    %c0 = arith.constant 0 : index
    %c0_0 = arith.constant 0 : index
    %0 = vector.load %arg1[%c0, %c0_0] : memref<128x8xf32, #tpu.memory_space<vmem>>, vector<128x8xf32>
    %c0_1 = arith.constant 0 : index
    %c0_2 = arith.constant 0 : index
    %1 = vector.load %arg2[%c0_1, %c0_2] : memref<1x8xf32, #tpu.memory_space<vmem>>, vector<1x8xf32>
    %2 = vector.broadcast %1 : vector<1x8xf32> to vector<128x8xf32>
    %3 = arith.mulf %0, %2 : vector<128x8xf32>
    %c0_3 = arith.constant 0 : index
    %c0_4 = arith.constant 0 : index
    %4 = vector.load %arg3[%c0_3, %c0_4] : memref<1x8xf32, #tpu.memory_space<vmem>>, vector<1x8xf32>
    %5 = vector.broadcast %4 : vector<1x8xf32> to vector<128x8xf32>
    %6 = arith.addf %3, %5 : vector<128x8xf32>
    %cst = arith.constant 0.000000e+00 : f32
    %7 = vector.broadcast %cst : f32 to vector<128x8xf32>
    %8 = arith.maximumf %6, %7 : vector<128x8xf32>
    %c0_5 = arith.constant 0 : index
    %c0_6 = arith.constant 0 : index
    %9 = vector.load %arg4[%c0_5, %c0_6] : memref<8x8xf32, #tpu.memory_space<vmem>>, vector<8x8xf32>
    %cst_7 = arith.constant dense<0.000000e+00> : vector<128x8xf32>
    %10 = tpu.matmul %8, %9, %cst_7 {dimension_numbers = #tpu.dot_dimension_numbers<[1], [0], [0], [1], [0, 0, 1, 1], [], []>} : vector<128x8xf32>, vector<8x8xf32>, vector<128x8xf32> -> vector<128x8xf32>
    %c0_8 = arith.constant 0 : index
    %c0_9 = arith.constant 0 : index
    %11 = vector.load %arg5[%c0_8, %c0_9] : memref<128x8xf32, #tpu.memory_space<vmem>>, vector<128x8xf32>
    tpu.vector_store %arg5[%c0_8, %c0_9], %10 {strides = array<i32>} : memref<128x8xf32, #tpu.memory_space<vmem>>, vector<128x8xf32>,
    %cst_10 = arith.constant dense<0.000000e+00> : vector<8xf32>
    %12 = vector.multi_reduction <add>, %10, %cst_10 [0] : vector<128x8xf32> to vector<8xf32>
    %13 = vector.shape_cast %12 : vector<8xf32> to vector<1x8xf32>
    %14 = arith.mulf %10, %10 : vector<128x8xf32>
    %cst_11 = arith.constant dense<0.000000e+00> : vector<8xf32>
    %15 = vector.multi_reduction <add>, %14, %cst_11 [0] : vector<128x8xf32> to vector<8xf32>
    %16 = vector.shape_cast %15 : vector<8xf32> to vector<1x8xf32>
    %17 = tpu.concatenate %13, %16 in 0 : vector<1x8xf32>, vector<1x8xf32> -> vector<2x8xf32>
    %18 = vector.shape_cast %17 : vector<2x8xf32> to vector<1x2x8xf32>
    %c0_12 = arith.constant 0 : index
    %c0_13 = arith.constant 0 : index
    %c0_14 = arith.constant 0 : index
    %19 = vector.load %arg6[%c0_12, %c0_13, %c0_14] : memref<1x2x8xf32, #tpu.memory_space<vmem>>, vector<1x2x8xf32>
    tpu.vector_store %arg6[%c0_12, %c0_13, %c0_14], %18 {strides = array<i32>} : memref<1x2x8xf32, #tpu.memory_space<vmem>>, vector<1x2x8xf32>,
    return
  }
  func.func @transform_0(%arg0: i32) -> (i32, i32) {
    %c0_i32 = arith.constant 0 : i32
    %c0_i32_0 = arith.constant 0 : i32
    return %arg0, %c0_i32 : i32, i32
  }
  func.func @transform_1(%arg0: i32) -> (i32, i32) {
    %c0_i32 = arith.constant 0 : i32
    %c0_i32_0 = arith.constant 0 : i32
    %c0_i32_1 = arith.constant 0 : i32
    return %c0_i32, %c0_i32_0 : i32, i32
  }
  func.func @transform_2(%arg0: i32) -> (i32, i32) {
    %c0_i32 = arith.constant 0 : i32
    %c0_i32_0 = arith.constant 0 : i32
    %c0_i32_1 = arith.constant 0 : i32
    return %c0_i32, %c0_i32_0 : i32, i32
  }
  func.func @transform_3(%arg0: i32) -> (i32, i32) {
    %c0_i32 = arith.constant 0 : i32
    %c0_i32_0 = arith.constant 0 : i32
    %c0_i32_1 = arith.constant 0 : i32
    return %c0_i32, %c0_i32_0 : i32, i32
  }
  func.func @transform_4(%arg0: i32) -> (i32, i32) {
    %c0_i32 = arith.constant 0 : i32
    %c0_i32_0 = arith.constant 0 : i32
    return %arg0, %c0_i32 : i32, i32
  }
  func.func @transform_5(%arg0: i32) -> (i32, i32, i32) {
    %c0_i32 = arith.constant 0 : i32
    %c0_i32_0 = arith.constant 0 : i32
    %c0_i32_1 = arith.constant 0 : i32
    return %arg0, %c0_i32, %c0_i32_0 : i32, i32, i32
  }
}

module attributes {stable_mosaic.version = 11 : i64} {
  func.func @_conv2_kernel(%arg0: i32, %arg1: i32, %arg2: memref<1x16x16x8xf32, #tpu.memory_space<vmem>>, %arg3: memref<1x8xf32, #tpu.memory_space<vmem>>, %arg4: memref<1x8xf32, #tpu.memory_space<vmem>>, %arg5: memref<3x24x8xf32, #tpu.memory_space<vmem>>, %arg6: memref<1x4x16x8xf32, #tpu.memory_space<vmem>>, %arg7: memref<1x1x2x8xf32, #tpu.memory_space<vmem>>, %arg8: memref<6x16x24xf32, #tpu.memory_space<vmem>>) attributes {dimension_semantics = [#tpu.dimension_semantics<parallel>, #tpu.dimension_semantics<parallel>], iteration_bounds = array<i64: 2, 4>, scalar_prefetch = 0 : i64, scratch_operands = 1 : i64, tpu.core_type = #tpu.core_type<tc>, window_params = [{transform_indices = @transform_0, window_bounds = array<i64: 1, 16, 16, 8>}, {pipeline_mode = #tpu.pipeline_mode<synchronous>, transform_indices = @transform_1, window_bounds = array<i64: 1, 8>}, {pipeline_mode = #tpu.pipeline_mode<synchronous>, transform_indices = @transform_2, window_bounds = array<i64: 1, 8>}, {pipeline_mode = #tpu.pipeline_mode<synchronous>, transform_indices = @transform_3, window_bounds = array<i64: 3, 24, 8>}, {transform_indices = @transform_4, window_bounds = array<i64: 1, 4, 16, 8>}, {transform_indices = @transform_5, window_bounds = array<i64: 1, 1, 2, 8>}]} {
    %c4_i32 = arith.constant 4 : i32
    %0 = arith.muli %arg1, %c4_i32 : i32
    %c1_i32 = arith.constant 1 : i32
    %1 = arith.subi %0, %c1_i32 : i32
    %c0_i32 = arith.constant 0 : i32
    %2 = arith.maxsi %1, %c0_i32 : i32
    %c4_i32_0 = arith.constant 4 : i32
    %3 = arith.addi %0, %c4_i32_0 : i32
    %c15_i32 = arith.constant 15 : i32
    %4 = arith.minsi %3, %c15_i32 : i32
    %c0 = arith.constant 0 : index
    %5 = arith.index_cast %2 : i32 to index
    %c0_1 = arith.constant 0 : index
    %c0_2 = arith.constant 0 : index
    %6 = vector.load %arg2[%c0, %5, %c0_1, %c0_2] : memref<1x16x16x8xf32, #tpu.memory_space<vmem>>, vector<1x1x16x8xf32>
    %7 = vector.shape_cast %6 : vector<1x1x16x8xf32> to vector<1x16x8xf32>
    %c0_3 = arith.constant 0 : index
    %8 = arith.index_cast %0 : i32 to index
    %c0_4 = arith.constant 0 : index
    %c0_5 = arith.constant 0 : index
    %9 = vector.load %arg2[%c0_3, %8, %c0_4, %c0_5] : memref<1x16x16x8xf32, #tpu.memory_space<vmem>>, vector<1x4x16x8xf32>
    %10 = vector.shape_cast %9 : vector<1x4x16x8xf32> to vector<4x16x8xf32>
    %c0_6 = arith.constant 0 : index
    %11 = arith.index_cast %4 : i32 to index
    %c0_7 = arith.constant 0 : index
    %c0_8 = arith.constant 0 : index
    %12 = vector.load %arg2[%c0_6, %11, %c0_7, %c0_8] : memref<1x16x16x8xf32, #tpu.memory_space<vmem>>, vector<1x1x16x8xf32>
    %13 = vector.shape_cast %12 : vector<1x1x16x8xf32> to vector<1x16x8xf32>
    %14 = tpu.concatenate %7, %10, %13 in 0 : vector<1x16x8xf32>, vector<4x16x8xf32>, vector<1x16x8xf32> -> vector<6x16x8xf32>
    %c0_9 = arith.constant 0 : index
    %c0_10 = arith.constant 0 : index
    %15 = vector.load %arg3[%c0_9, %c0_10] : memref<1x8xf32, #tpu.memory_space<vmem>>, vector<1x8xf32>
    %16 = vector.shape_cast %15 : vector<1x8xf32> to vector<1x1x8xf32>
    %17 = vector.broadcast %16 : vector<1x1x8xf32> to vector<6x16x8xf32>
    %18 = arith.mulf %14, %17 : vector<6x16x8xf32>
    %c0_11 = arith.constant 0 : index
    %c0_12 = arith.constant 0 : index
    %19 = vector.load %arg4[%c0_11, %c0_12] : memref<1x8xf32, #tpu.memory_space<vmem>>, vector<1x8xf32>
    %20 = vector.shape_cast %19 : vector<1x8xf32> to vector<1x1x8xf32>
    %21 = vector.broadcast %20 : vector<1x1x8xf32> to vector<6x16x8xf32>
    %22 = arith.addf %18, %21 : vector<6x16x8xf32>
    %cst = arith.constant 0.000000e+00 : f32
    %23 = vector.broadcast %cst : f32 to vector<6x16x8xf32>
    %24 = arith.maximumf %22, %23 : vector<6x16x8xf32>
    %c1_i32_13 = arith.constant 1 : i32
    %25 = arith.subi %0, %c1_i32_13 : i32
    %26 = tpu.iota {dimensions = array<i32: 0>} : vector<6x16x8xi32>
    %27 = vector.broadcast %25 : i32 to vector<6x16x8xi32>
    %28 = arith.addi %27, %26 : vector<6x16x8xi32>
    %c0_i32_14 = arith.constant 0 : i32
    %29 = vector.broadcast %c0_i32_14 : i32 to vector<6x16x8xi32>
    %30 = arith.cmpi sge, %28, %29 : vector<6x16x8xi32>
    %c16_i32 = arith.constant 16 : i32
    %31 = vector.broadcast %c16_i32 : i32 to vector<6x16x8xi32>
    %32 = arith.cmpi slt, %28, %31 : vector<6x16x8xi32>
    %33 = arith.andi %30, %32 : vector<6x16x8xi1>
    %cst_15 = arith.constant 0.000000e+00 : f32
    %34 = vector.broadcast %cst_15 : f32 to vector<6x16x8xf32>
    %35 = arith.select %33, %24, %34 : vector<6x16x8xi1>, vector<6x16x8xf32>
    %cst_16 = arith.constant 0.000000e+00 : f32
    %36 = vector.broadcast %cst_16 : f32 to vector<6x1x8xf32>
    %37 = vector.extract_strided_slice %35 {offsets = [0, 0, 0], sizes = [6, 15, 8], strides = [1, 1, 1]} : vector<6x16x8xf32> to vector<6x15x8xf32>
    %38 = tpu.concatenate %36, %37 in 1 : vector<6x1x8xf32>, vector<6x15x8xf32> -> vector<6x16x8xf32>
    %39 = vector.extract_strided_slice %35 {offsets = [0, 1, 0], sizes = [6, 15, 8], strides = [1, 1, 1]} : vector<6x16x8xf32> to vector<6x15x8xf32>
    %40 = tpu.concatenate %39, %36 in 1 : vector<6x15x8xf32>, vector<6x1x8xf32> -> vector<6x16x8xf32>
    %41 = tpu.concatenate %38, %35, %40 in 2 : vector<6x16x8xf32>, vector<6x16x8xf32>, vector<6x16x8xf32> -> vector<6x16x24xf32>
    %c0_17 = arith.constant 0 : index
    %c0_18 = arith.constant 0 : index
    %c0_19 = arith.constant 0 : index
    %42 = vector.load %arg8[%c0_17, %c0_18, %c0_19] : memref<6x16x24xf32, #tpu.memory_space<vmem>>, vector<6x16x24xf32>
    tpu.vector_store %arg8[%c0_17, %c0_18, %c0_19], %41 {strides = array<i32>} : memref<6x16x24xf32, #tpu.memory_space<vmem>>, vector<6x16x24xf32>,
    %c0_20 = arith.constant 0 : index
    %c0_21 = arith.constant 0 : index
    %c0_22 = arith.constant 0 : index
    %43 = vector.load %arg8[%c0_20, %c0_21, %c0_22] : memref<6x16x24xf32, #tpu.memory_space<vmem>>, vector<4x16x24xf32>
    %44 = vector.shape_cast %43 : vector<4x16x24xf32> to vector<64x24xf32>
    %c0_23 = arith.constant 0 : index
    %c0_24 = arith.constant 0 : index
    %c0_25 = arith.constant 0 : index
    %45 = vector.load %arg5[%c0_23, %c0_24, %c0_25] : memref<3x24x8xf32, #tpu.memory_space<vmem>>, vector<1x24x8xf32>
    %46 = vector.shape_cast %45 : vector<1x24x8xf32> to vector<24x8xf32>
    %cst_26 = arith.constant dense<0.000000e+00> : vector<64x8xf32>
    %47 = tpu.matmul %44, %46, %cst_26 {dimension_numbers = #tpu.dot_dimension_numbers<[1], [0], [0], [1], [0, 0, 1, 1], [], []>} : vector<64x24xf32>, vector<24x8xf32>, vector<64x8xf32> -> vector<64x8xf32>
    %c1 = arith.constant 1 : index
    %c0_27 = arith.constant 0 : index
    %c0_28 = arith.constant 0 : index
    %48 = vector.load %arg8[%c1, %c0_27, %c0_28] : memref<6x16x24xf32, #tpu.memory_space<vmem>>, vector<4x16x24xf32>
    %49 = vector.shape_cast %48 : vector<4x16x24xf32> to vector<64x24xf32>
    %c1_29 = arith.constant 1 : index
    %c0_30 = arith.constant 0 : index
    %c0_31 = arith.constant 0 : index
    %50 = vector.load %arg5[%c1_29, %c0_30, %c0_31] : memref<3x24x8xf32, #tpu.memory_space<vmem>>, vector<1x24x8xf32>
    %51 = vector.shape_cast %50 : vector<1x24x8xf32> to vector<24x8xf32>
    %cst_32 = arith.constant dense<0.000000e+00> : vector<64x8xf32>
    %52 = tpu.matmul %49, %51, %cst_32 {dimension_numbers = #tpu.dot_dimension_numbers<[1], [0], [0], [1], [0, 0, 1, 1], [], []>} : vector<64x24xf32>, vector<24x8xf32>, vector<64x8xf32> -> vector<64x8xf32>
    %53 = arith.addf %47, %52 : vector<64x8xf32>
    %c2 = arith.constant 2 : index
    %c0_33 = arith.constant 0 : index
    %c0_34 = arith.constant 0 : index
    %54 = vector.load %arg8[%c2, %c0_33, %c0_34] : memref<6x16x24xf32, #tpu.memory_space<vmem>>, vector<4x16x24xf32>
    %55 = vector.shape_cast %54 : vector<4x16x24xf32> to vector<64x24xf32>
    %c2_35 = arith.constant 2 : index
    %c0_36 = arith.constant 0 : index
    %c0_37 = arith.constant 0 : index
    %56 = vector.load %arg5[%c2_35, %c0_36, %c0_37] : memref<3x24x8xf32, #tpu.memory_space<vmem>>, vector<1x24x8xf32>
    %57 = vector.shape_cast %56 : vector<1x24x8xf32> to vector<24x8xf32>
    %cst_38 = arith.constant dense<0.000000e+00> : vector<64x8xf32>
    %58 = tpu.matmul %55, %57, %cst_38 {dimension_numbers = #tpu.dot_dimension_numbers<[1], [0], [0], [1], [0, 0, 1, 1], [], []>} : vector<64x24xf32>, vector<24x8xf32>, vector<64x8xf32> -> vector<64x8xf32>
    %59 = arith.addf %53, %58 : vector<64x8xf32>
    %60 = vector.shape_cast %59 : vector<64x8xf32> to vector<1x4x16x8xf32>
    %c0_39 = arith.constant 0 : index
    %c0_40 = arith.constant 0 : index
    %c0_41 = arith.constant 0 : index
    %c0_42 = arith.constant 0 : index
    %61 = vector.load %arg6[%c0_39, %c0_40, %c0_41, %c0_42] : memref<1x4x16x8xf32, #tpu.memory_space<vmem>>, vector<1x4x16x8xf32>
    tpu.vector_store %arg6[%c0_39, %c0_40, %c0_41, %c0_42], %60 {strides = array<i32>} : memref<1x4x16x8xf32, #tpu.memory_space<vmem>>, vector<1x4x16x8xf32>,
    %cst_43 = arith.constant dense<0.000000e+00> : vector<8xf32>
    %62 = vector.multi_reduction <add>, %59, %cst_43 [0] : vector<64x8xf32> to vector<8xf32>
    %63 = vector.shape_cast %62 : vector<8xf32> to vector<1x8xf32>
    %64 = arith.mulf %59, %59 : vector<64x8xf32>
    %cst_44 = arith.constant dense<0.000000e+00> : vector<8xf32>
    %65 = vector.multi_reduction <add>, %64, %cst_44 [0] : vector<64x8xf32> to vector<8xf32>
    %66 = vector.shape_cast %65 : vector<8xf32> to vector<1x8xf32>
    %67 = tpu.concatenate %63, %66 in 0 : vector<1x8xf32>, vector<1x8xf32> -> vector<2x8xf32>
    %68 = vector.shape_cast %67 : vector<2x8xf32> to vector<1x1x2x8xf32>
    %c0_45 = arith.constant 0 : index
    %c0_46 = arith.constant 0 : index
    %c0_47 = arith.constant 0 : index
    %c0_48 = arith.constant 0 : index
    %69 = vector.load %arg7[%c0_45, %c0_46, %c0_47, %c0_48] : memref<1x1x2x8xf32, #tpu.memory_space<vmem>>, vector<1x1x2x8xf32>
    tpu.vector_store %arg7[%c0_45, %c0_46, %c0_47, %c0_48], %68 {strides = array<i32>} : memref<1x1x2x8xf32, #tpu.memory_space<vmem>>, vector<1x1x2x8xf32>,
    return
  }
  func.func @transform_0(%arg0: i32, %arg1: i32) -> (i32, i32, i32, i32) {
    %c0_i32 = arith.constant 0 : i32
    %c0_i32_0 = arith.constant 0 : i32
    %c0_i32_1 = arith.constant 0 : i32
    %c0_i32_2 = arith.constant 0 : i32
    return %arg0, %c0_i32, %c0_i32_0, %c0_i32_1 : i32, i32, i32, i32
  }
  func.func @transform_1(%arg0: i32, %arg1: i32) -> (i32, i32) {
    %c0_i32 = arith.constant 0 : i32
    %c0_i32_0 = arith.constant 0 : i32
    %c0_i32_1 = arith.constant 0 : i32
    return %c0_i32, %c0_i32_0 : i32, i32
  }
  func.func @transform_2(%arg0: i32, %arg1: i32) -> (i32, i32) {
    %c0_i32 = arith.constant 0 : i32
    %c0_i32_0 = arith.constant 0 : i32
    %c0_i32_1 = arith.constant 0 : i32
    return %c0_i32, %c0_i32_0 : i32, i32
  }
  func.func @transform_3(%arg0: i32, %arg1: i32) -> (i32, i32, i32) {
    %c0_i32 = arith.constant 0 : i32
    %c0_i32_0 = arith.constant 0 : i32
    %c0_i32_1 = arith.constant 0 : i32
    %c0_i32_2 = arith.constant 0 : i32
    return %c0_i32, %c0_i32_0, %c0_i32_1 : i32, i32, i32
  }
  func.func @transform_4(%arg0: i32, %arg1: i32) -> (i32, i32, i32, i32) {
    %c0_i32 = arith.constant 0 : i32
    %c0_i32_0 = arith.constant 0 : i32
    %c0_i32_1 = arith.constant 0 : i32
    return %arg0, %arg1, %c0_i32, %c0_i32_0 : i32, i32, i32, i32
  }
  func.func @transform_5(%arg0: i32, %arg1: i32) -> (i32, i32, i32, i32) {
    %c0_i32 = arith.constant 0 : i32
    %c0_i32_0 = arith.constant 0 : i32
    %c0_i32_1 = arith.constant 0 : i32
    return %arg0, %arg1, %c0_i32, %c0_i32_0 : i32, i32, i32, i32
  }
}

module attributes {stable_mosaic.version = 11 : i64} {
  func.func @_bn3_add_relu_kernel(%arg0: i32, %arg1: memref<128x8xf32, #tpu.memory_space<vmem>>, %arg2: memref<128x4xf32, #tpu.memory_space<vmem>>, %arg3: memref<1x8xf32, #tpu.memory_space<vmem>>, %arg4: memref<1x8xf32, #tpu.memory_space<vmem>>, %arg5: memref<128x8xf32, #tpu.memory_space<vmem>>) attributes {dimension_semantics = [#tpu.dimension_semantics<parallel>], iteration_bounds = array<i64: 4>, scalar_prefetch = 0 : i64, scratch_operands = 0 : i64, tpu.core_type = #tpu.core_type<tc>, window_params = [{transform_indices = @transform_0, window_bounds = array<i64: 128, 8>}, {transform_indices = @transform_1, window_bounds = array<i64: 128, 4>}, {pipeline_mode = #tpu.pipeline_mode<synchronous>, transform_indices = @transform_2, window_bounds = array<i64: 1, 8>}, {pipeline_mode = #tpu.pipeline_mode<synchronous>, transform_indices = @transform_3, window_bounds = array<i64: 1, 8>}, {transform_indices = @transform_4, window_bounds = array<i64: 128, 8>}]} {
    %c0 = arith.constant 0 : index
    %c0_0 = arith.constant 0 : index
    %0 = vector.load %arg1[%c0, %c0_0] : memref<128x8xf32, #tpu.memory_space<vmem>>, vector<128x8xf32>
    %c0_1 = arith.constant 0 : index
    %c0_2 = arith.constant 0 : index
    %1 = vector.load %arg3[%c0_1, %c0_2] : memref<1x8xf32, #tpu.memory_space<vmem>>, vector<1x8xf32>
    %2 = vector.broadcast %1 : vector<1x8xf32> to vector<128x8xf32>
    %3 = arith.mulf %0, %2 : vector<128x8xf32>
    %c0_3 = arith.constant 0 : index
    %c0_4 = arith.constant 0 : index
    %4 = vector.load %arg4[%c0_3, %c0_4] : memref<1x8xf32, #tpu.memory_space<vmem>>, vector<1x8xf32>
    %5 = vector.broadcast %4 : vector<1x8xf32> to vector<128x8xf32>
    %6 = arith.addf %3, %5 : vector<128x8xf32>
    %c0_5 = arith.constant 0 : index
    %c0_6 = arith.constant 0 : index
    %7 = vector.load %arg2[%c0_5, %c0_6] : memref<128x4xf32, #tpu.memory_space<vmem>>, vector<128x4xf32>
    %cst = arith.constant 0.000000e+00 : f32
    %8 = vector.broadcast %cst : f32 to vector<128x4xf32>
    %9 = tpu.concatenate %7, %8 in 1 : vector<128x4xf32>, vector<128x4xf32> -> vector<128x8xf32>
    %10 = arith.addf %6, %9 : vector<128x8xf32>
    %cst_7 = arith.constant 0.000000e+00 : f32
    %11 = vector.broadcast %cst_7 : f32 to vector<128x8xf32>
    %12 = arith.maximumf %10, %11 : vector<128x8xf32>
    %c0_8 = arith.constant 0 : index
    %c0_9 = arith.constant 0 : index
    %13 = vector.load %arg5[%c0_8, %c0_9] : memref<128x8xf32, #tpu.memory_space<vmem>>, vector<128x8xf32>
    tpu.vector_store %arg5[%c0_8, %c0_9], %12 {strides = array<i32>} : memref<128x8xf32, #tpu.memory_space<vmem>>, vector<128x8xf32>,
    return
  }
  func.func @transform_0(%arg0: i32) -> (i32, i32) {
    %c0_i32 = arith.constant 0 : i32
    %c0_i32_0 = arith.constant 0 : i32
    return %arg0, %c0_i32 : i32, i32
  }
  func.func @transform_1(%arg0: i32) -> (i32, i32) {
    %c0_i32 = arith.constant 0 : i32
    %c0_i32_0 = arith.constant 0 : i32
    return %arg0, %c0_i32 : i32, i32
  }
  func.func @transform_2(%arg0: i32) -> (i32, i32) {
    %c0_i32 = arith.constant 0 : i32
    %c0_i32_0 = arith.constant 0 : i32
    %c0_i32_1 = arith.constant 0 : i32
    return %c0_i32, %c0_i32_0 : i32, i32
  }
  func.func @transform_3(%arg0: i32) -> (i32, i32) {
    %c0_i32 = arith.constant 0 : i32
    %c0_i32_0 = arith.constant 0 : i32
    %c0_i32_1 = arith.constant 0 : i32
    return %c0_i32, %c0_i32_0 : i32, i32
  }
  func.func @transform_4(%arg0: i32) -> (i32, i32) {
    %c0_i32 = arith.constant 0 : i32
    %c0_i32_0 = arith.constant 0 : i32
    return %arg0, %c0_i32 : i32, i32
  }
}

</mosaic_0001>

<llo_original>
// kernel: bottleneck_forward.4
$region0: #{bottleneck_forward.4}
  #allocation0 [shape = 'u32[]', space=smem, size = 0x4, offset = 0x4, fixed_abs, tag = 'smem constant byte address 0x4 - core index']
  #allocation1 [shape = 'u32[72,128]{1,0:T(1,128)}', space=vmem, size = 0x9000, scoped, tag = 'internal scratch']
  %s0 = inlined_call_operand.vmem [shape: f32[512,4], index: 0, kind: input, shape index: {}]
  %s1 = inlined_call_operand.vmem [shape: f32[4,8], index: 1, kind: input, shape index: {}]
  %s2 = inlined_call_operand.vmem [shape: f32[512,8], index: 2, kind: output, shape index: {0}]
  %s3 = inlined_call_operand.vmem [shape: f32[4,2,8], index: 3, kind: output, shape index: {1}]
  %4 = xla_tuple %s2, %s3
  %s5 = sld [smem:[#allocation0]]
  $region49: #{bottleneck_forward.4} parent=0
    _
  %s7 = ssub.s32 1, %s5
  %s8 = scalar_select 0, %s7, %s5
  loop: start=0, step=1, limit=6
  $region2: #{bottleneck_forward.4} parent=0 // loop_pre_header
    _
  $region3: #{bottleneck_forward.4} parent=0 // loop_header
    %s10 = sphi 0, %s14
    %p11 = scmp.ge.s32.totalorder %s10, 6
    %s20 = sphi 0, %s22
    %s23 = sphi 0, %s20
    %s24 = sphi 0, %s23
    %s40 = sphi 0, %s24
    %s44 = sphi 0, %s44
    %s46 = sphi 0, %s44
    %s47 = sphi 0, %s46
    %s61 = sphi 0, %s47
    %s67 = sphi 0, %s69
    %s70 = sphi 0, %s67
    %s71 = sphi 0, %s70
    %s87 = sphi 0, %s71
    %s93 = sphi 0, %s95
    %s96 = sphi 0, %s93
    %s97 = sphi 0, %s96
    %s113 = sphi 0, %s97
  $region4: #{bottleneck_forward.4} parent=0 // loop_header_branch
    %13 = sbr.rel (%p11) target = $region8
  $region5: #{bottleneck_forward.4} parent=0 // loop_body
    %s15 = ssub.s32 %s10, 1
    %s16 = ssub.s32 %s10, 2
    %s17 = sadd.s32 %s10, 1
    %s18 = ssub.s32 %s10, %s17
    %p19 = scmp.eq.s32.totalorder %s18, 0
    %s21 = sadd.s32 %s20, 1
    %s22 = scalar_select %p19, %s20, %s21
    %p25 = pneg %p19
    %p26 = scmp.eq.s32.totalorder %s10, 3
    %p27 = por %p25, %p26
    %p28 = scmp.ne.s32.totalorder %s20, %s23
    %p29 = scmp.eq.s32.totalorder %s10, 0
    %p30 = por %p28, %p29
    %p31 = scmp.ne.s32.totalorder %s20, %s23
    %p32 = scmp.eq.s32.totalorder %s15, 3
    %p33 = por %p31, %p32
    %p34 = scmp.ne.s32.totalorder %s23, %s24
    %p35 = scmp.eq.s32.totalorder %s15, 0
    %p36 = por %p34, %p35
    %p37 = scmp.ne.s32.totalorder %s23, %s24
    %p38 = scmp.eq.s32.totalorder %s16, 3
    %p39 = por %p37, %p38
    %p41 = scmp.ne.s32.totalorder %s24, %s40
    %p42 = scmp.eq.s32.totalorder %s16, 0
    %p43 = por %p41, %p42
    %s45 = sadd.s32 %s44, 1
    %p48 = scmp.eq.s32.totalorder %s10, 3
    %p49 = scmp.ne.s32.totalorder %s44, %s46
    %p50 = scmp.eq.s32.totalorder %s10, 0
    %p51 = por %p49, %p50
    %p52 = scmp.ne.s32.totalorder %s44, %s46
    %p53 = scmp.eq.s32.totalorder %s15, 3
    %p54 = por %p52, %p53
    %p55 = scmp.ne.s32.totalorder %s46, %s47
    %p56 = scmp.eq.s32.totalorder %s15, 0
    %p57 = por %p55, %p56
    %p58 = scmp.ne.s32.totalorder %s46, %s47
    %p59 = scmp.eq.s32.totalorder %s16, 3
    %p60 = por %p58, %p59
    %p62 = scmp.ne.s32.totalorder %s47, %s61
    %p63 = scmp.eq.s32.totalorder %s16, 0
    %p64 = por %p62, %p63
    %s65 = ssub.s32 %s10, %s17
    %p66 = scmp.eq.s32.totalorder %s65, 0
    %s68 = sadd.s32 %s67, 1
    %s69 = scalar_select %p66, %s67, %s68
    %p72 = pneg %p66
    %p73 = scmp.eq.s32.totalorder %s10, 3
    %p74 = por %p72, %p73
    %p75 = scmp.ne.s32.totalorder %s67, %s70
    %p76 = scmp.eq.s32.totalorder %s10, 0
    %p77 = por %p75, %p76
    %p78 = scmp.ne.s32.totalorder %s67, %s70
    %p79 = scmp.eq.s32.totalorder %s15, 3
    %p80 = por %p78, %p79
    %p81 = scmp.ne.s32.totalorder %s70, %s71
    %p82 = scmp.eq.s32.totalorder %s15, 0
    %p83 = por %p81, %p82
    %p84 = scmp.ne.s32.totalorder %s70, %s71
    %p85 = scmp.eq.s32.totalorder %s16, 3
    %p86 = por %p84, %p85
    %p88 = scmp.ne.s32.totalorder %s71, %s87
    %p89 = scmp.eq.s32.totalorder %s16, 0
    %p90 = por %p88, %p89
    %s91 = ssub.s32 %s10, %s17
    %p92 = scmp.eq.s32.totalorder %s91, 0
    %s94 = sadd.s32 %s93, 1
    %s95 = scalar_select %p92, %s93, %s94
    %p98 = pneg %p92
    %p99 = scmp.eq.s32.totalorder %s10, 3
    %p100 = por %p98, %p99
    %p101 = scmp.ne.s32.totalorder %s93, %s96
    %p102 = scmp.eq.s32.totalorder %s10, 0
    %p103 = por %p101, %p102
    %p104 = scmp.ne.s32.totalorder %s93, %s96
    %p105 = scmp.eq.s32.totalorder %s15, 3
    %p106 = por %p104, %p105
    %p107 = scmp.ne.s32.totalorder %s96, %s97
    %p108 = scmp.eq.s32.totalorder %s15, 0
    %p109 = por %p107, %p108
    %p110 = scmp.ne.s32.totalorder %s96, %s97
    %p111 = scmp.eq.s32.totalorder %s16, 3
    %p112 = por %p110, %p111
    %p114 = scmp.ne.s32.totalorder %s97, %s113
    %p115 = scmp.eq.s32.totalorder %s16, 0
    %p116 = por %p114, %p115
    %p117 = scmp.le.s32.totalorder 1, %s10
    %p118 = scmp.lt.s32.totalorder %s10, 5
    %p119 = pnand %p117, %p118
    %p120 = pneg %p119
    // Predicated region
    $region9: #{bottleneck_forward.4} parent=5 // pred_check
      _
    $region10: #{bottleneck_forward.4} parent=5 // pred_check_branch
      %122 = sbr.rel (%p119) target = $region12
    $region11: #{bottleneck_forward.4} parent=5 // pred_region
      %s123 = ssub.s32 %s10, 1
      // Predicated region
      $region13: #{bottleneck_forward.4} parent=11 // pred_check
        %p124 = pneg %p57
      $region14: #{bottleneck_forward.4} parent=11 // pred_check_branch
        %126 = sbr.rel (%p124) target = $region16
      $region15: #{bottleneck_forward.4} parent=11 // pred_region
        _
      $region16: #{bottleneck_forward.4} parent=11 // pred_fallthru
        _
    $region12: #{bottleneck_forward.4} parent=5 // pred_fallthru
      _
    %p127 = scmp.lt.s32.totalorder %s10, 4
    // Predicated region
    $region17: #{bottleneck_forward.4} parent=5 // pred_check
      %p128 = pneg %p127
    $region18: #{bottleneck_forward.4} parent=5 // pred_check_branch
      %130 = sbr.rel (%p128) target = $region20
    $region19: #{bottleneck_forward.4} parent=5 // pred_region
      // Predicated region
      $region21: #{bottleneck_forward.4} parent=19 // pred_check
        %p131 = pneg %p30
      $region22: #{bottleneck_forward.4} parent=19 // pred_check_branch
        %133 = sbr.rel (%p131) target = $region24
      $region23: #{bottleneck_forward.4} parent=19 // pred_region
        %s134 = smul.u32 16, %s10
        %p135 = scmp.lt.s32.totalorder %s134, 63
        %s136 = scalar_select %p135, %s134, 63
        %s137 = smul.addr %s136, 8
        %s138 = scalar_lea.vmem %s0, %s137
        %s139 = smul.u32 16, %s10
      $region24: #{bottleneck_forward.4} parent=19 // pred_fallthru
        _
    $region20: #{bottleneck_forward.4} parent=5 // pred_fallthru
      _
    %p140 = scmp.le.s32.totalorder 1, %s10
    %p141 = scmp.lt.s32.totalorder %s10, 5
    %p142 = pnand %p140, %p141
    %p143 = pneg %p142
    // Predicated region
    $region25: #{bottleneck_forward.4} parent=5 // pred_check
      _
    $region26: #{bottleneck_forward.4} parent=5 // pred_check_branch
      %145 = sbr.rel (%p142) target = $region28
    $region27: #{bottleneck_forward.4} parent=5 // pred_region
      %s146 = ssub.s32 %s10, 1
      %s147 = smul.u32 16, %s15
      %p148 = scmp.lt.s32.totalorder %s147, 63
      %s149 = scalar_select %p148, %s147, 63
      %s150 = smul.addr %s149, 8
      %s151 = scalar_lea.vmem %s0, %s150
      %p152 = pneg %p36
      %p153 = pneg %p33
      %p154 = pneg %p57
      %p155 = pneg %p54
      %p156 = pneg %p83
      %p157 = pneg %p80
      %s158 = smul.u32 16, %s15
      %p159 = scmp.lt.s32.totalorder %s158, 63
      %s160 = scalar_select %p159, %s158, 63
      %s161 = smul.addr %s160, 8
      %s162 = scalar_lea.vmem %s2, %s161
      %p163 = pneg %p109
      %p164 = pneg %p106
      %p165 = scmp.lt.s32.totalorder %s15, 3
      %s166 = scalar_select %p165, %s15, 3
      %s167 = smul.addr %s166, 2
      %s168 = scalar_lea.vmem %s3, %s167
      %s169 = smul.u32 16, %s15
      %p170 = scmp.lt.s32.totalorder %s169, 63
      %s171 = scalar_select %p170, %s169, 63
      %s172 = smul.addr %s171, 8
      %s173 = scalar_lea.vmem %s0, %s172
      %s174 = smul.u32 16, %s15
      %s175 = smul.u32 16, %s15
      %p176 = scmp.lt.s32.totalorder %s175, 63
      %s177 = scalar_select %p176, %s175, 63
      %s178 = smul.addr %s177, 8
      %s179 = scalar_lea.vmem %s2, %s178
      %s180 = smul.u32 16, %s15
      %p181 = scmp.lt.s32.totalorder %s15, 3
      %s182 = scalar_select %p181, %s15, 3
      %s183 = smul.addr %s182, 2
      %s184 = scalar_lea.vmem %s3, %s183
      %v185 = vld [vmem:[%s173] sm:$0xff]
      %v186 = vld [vmem:[%s173 + $0x8] sm:$0xff]
      %v187 = vld [vmem:[%s173 + $0x10] sm:$0xff]
      %v188 = vld [vmem:[%s173 + $0x18] sm:$0xff]
      %v189 = vld [vmem:[%s173 + $0x20] sm:$0xff]
      %v190 = vld [vmem:[%s173 + $0x28] sm:$0xff]
      %v191 = vld [vmem:[%s173 + $0x30] sm:$0xff]
      %v192 = vld [vmem:[%s173 + $0x38] sm:$0xff]
      %v193 = vld [vmem:[%s173 + $0x40] sm:$0xff]
      %v194 = vld [vmem:[%s173 + $0x48] sm:$0xff]
      %v195 = vld [vmem:[%s173 + $0x50] sm:$0xff]
      %v196 = vld [vmem:[%s173 + $0x58] sm:$0xff]
      %v197 = vld [vmem:[%s173 + $0x60] sm:$0xff]
      %v198 = vld [vmem:[%s173 + $0x68] sm:$0xff]
      %v199 = vld [vmem:[%s173 + $0x70] sm:$0xff]
      %v200 = vld [vmem:[%s173 + $0x78] sm:$0xff]
      %v201 = vld [vmem:[%s1] sm:$0xf]
      %vm202 = vcmask 31744
      %v204 = vsel %vm202, %v185, 0
      %v207 = vsel %vm202, %v186, 0
      %v210 = vsel %vm202, %v187, 0
      %v213 = vsel %vm202, %v188, 0
      %v216 = vsel %vm202, %v189, 0
      %v219 = vsel %vm202, %v190, 0
      %v222 = vsel %vm202, %v191, 0
      %v225 = vsel %vm202, %v192, 0
      %v228 = vsel %vm202, %v193, 0
      %v231 = vsel %vm202, %v194, 0
      %v234 = vsel %vm202, %v195, 0
      %v237 = vsel %vm202, %v196, 0
      %v240 = vsel %vm202, %v197, 0
      %v243 = vsel %vm202, %v198, 0
      %v246 = vsel %vm202, %v199, 0
      %v249 = vsel %vm202, %v200, 0
      %vm251 = vcmask 1043456
      %v253 = vsel %vm251, %v201, 0
      %255 = vmatpush.msra.mxu0 0.0
      %256 = vmatpush.msra.mxu0 0.0
      %257 = vmatpush.msra.mxu0 0.0
      %258 = vmatpush.msra.mxu0 0.0
      %259 = vmatpush.msra.mxu0 0.0
      %260 = vmatpush.msra.mxu0 0.0
      %261 = vmatpush.msra.mxu0 0.0
      %262 = vmatpush.msra.mxu0 0.0
      %263 = vmatpush.msra.mxu0 0.0
      %264 = vmatpush.msra.mxu0 0.0
      %265 = vmatpush.msra.mxu0 0.0
      %266 = vmatpush.msra.mxu0 0.0
      %267 = vmatpush.msra.mxu0 0.0
      %268 = vmatpush.msra.mxu0 0.0
      %269 = vmatpush.msra.mxu0 0.0
      %270 = vmatpush.msra.mxu0 %v253
      %271 = vmatmul.f32.gmra.mxu0 %v204
      %v272 = vpop.f32.mrf.mxu0
      %v273 = vadd.f32 0.0, %v272
      %274 = vmatmul.f32.gmra.mxu0 %v207
      %v275 = vpop.f32.mrf.mxu0
      %v276 = vadd.f32 0.0, %v275
      %277 = vmatmul.f32.gmra.mxu0 %v210
      %v278 = vpop.f32.mrf.mxu0
      %v279 = vadd.f32 0.0, %v278
      %280 = vmatmul.f32.gmra.mxu0 %v213
      %v281 = vpop.f32.mrf.mxu0
      %v282 = vadd.f32 0.0, %v281
      %283 = vmatmul.f32.gmra.mxu0 %v216
      %v284 = vpop.f32.mrf.mxu0
      %v285 = vadd.f32 0.0, %v284
      %286 = vmatmul.f32.gmra.mxu0 %v219
      %v287 = vpop.f32.mrf.mxu0
      %v288 = vadd.f32 0.0, %v287
      %289 = vmatmul.f32.gmra.mxu0 %v222
      %v290 = vpop.f32.mrf.mxu0
      %v291 = vadd.f32 0.0, %v290
      %292 = vmatmul.f32.gmra.mxu0 %v225
      %v293 = vpop.f32.mrf.mxu0
      %v294 = vadd.f32 0.0, %v293
      %295 = vmatmul.f32.gmra.mxu0 %v228
      %v296 = vpop.f32.mrf.mxu0
      %v297 = vadd.f32 0.0, %v296
      %298 = vmatmul.f32.gmra.mxu0 %v231
      %v299 = vpop.f32.mrf.mxu0
      %v300 = vadd.f32 0.0, %v299
      %301 = vmatmul.f32.gmra.mxu0 %v234
      %v302 = vpop.f32.mrf.mxu0
      %v303 = vadd.f32 0.0, %v302
      %304 = vmatmul.f32.gmra.mxu0 %v237
      %v305 = vpop.f32.mrf.mxu0
      %v306 = vadd.f32 0.0, %v305
      %307 = vmatmul.f32.gmra.mxu0 %v240
      %v308 = vpop.f32.mrf.mxu0
      %v309 = vadd.f32 0.0, %v308
      %310 = vmatmul.f32.gmra.mxu0 %v243
      %v311 = vpop.f32.mrf.mxu0
      %v312 = vadd.f32 0.0, %v311
      %313 = vmatmul.f32.gmra.mxu0 %v246
      %v314 = vpop.f32.mrf.mxu0
      %v315 = vadd.f32 0.0, %v314
      %316 = vmatmul.f32.gmra.mxu0 %v249
      %v317 = vpop.f32.mrf.mxu0
      %v318 = vadd.f32 0.0, %v317
      %319 = vdwg.mxu0
      %vm320 = vcmask 64512
      %321 = vst.msk [vmem:[%s179] sm:$0xff] %vm320, %v273
      %322 = vst.msk [vmem:[%s179 + $0x8] sm:$0xff] %vm320, %v276
      %323 = vst.msk [vmem:[%s179 + $0x10] sm:$0xff] %vm320, %v279
      %324 = vst.msk [vmem:[%s179 + $0x18] sm:$0xff] %vm320, %v282
      %325 = vst.msk [vmem:[%s179 + $0x20] sm:$0xff] %vm320, %v285
      %326 = vst.msk [vmem:[%s179 + $0x28] sm:$0xff] %vm320, %v288
      %327 = vst.msk [vmem:[%s179 + $0x30] sm:$0xff] %vm320, %v291
      %328 = vst.msk [vmem:[%s179 + $0x38] sm:$0xff] %vm320, %v294
      %329 = vst.msk [vmem:[%s179 + $0x40] sm:$0xff] %vm320, %v297
      %330 = vst.msk [vmem:[%s179 + $0x48] sm:$0xff] %vm320, %v300
      %331 = vst.msk [vmem:[%s179 + $0x50] sm:$0xff] %vm320, %v303
      %332 = vst.msk [vmem:[%s179 + $0x58] sm:$0xff] %vm320, %v306
      %333 = vst.msk [vmem:[%s179 + $0x60] sm:$0xff] %vm320, %v309
      %334 = vst.msk [vmem:[%s179 + $0x68] sm:$0xff] %vm320, %v312
      %335 = vst.msk [vmem:[%s179 + $0x70] sm:$0xff] %vm320, %v315
      %336 = vst.msk [vmem:[%s179 + $0x78] sm:$0xff] %vm320, %v318
      %v337 = vsel %vm320, %v273, 0.0
      %v338 = vsel %vm320, %v276, 0.0
      %v339 = vadd.f32 %v337, %v338
      %v340 = vsel %vm320, %v279, 0.0
      %v341 = vadd.f32 %v339, %v340
      %v342 = vsel %vm320, %v282, 0.0
      %v343 = vadd.f32 %v341, %v342
      %v344 = vsel %vm320, %v285, 0.0
      %v345 = vadd.f32 %v343, %v344
      %v346 = vsel %vm320, %v288, 0.0
      %v347 = vadd.f32 %v345, %v346
      %v348 = vsel %vm320, %v291, 0.0
      %v349 = vadd.f32 %v347, %v348
      %v350 = vsel %vm320, %v294, 0.0
      %v351 = vadd.f32 %v349, %v350
      %v352 = vsel %vm320, %v297, 0.0
      %v353 = vadd.f32 %v351, %v352
      %v354 = vsel %vm320, %v300, 0.0
      %v355 = vadd.f32 %v353, %v354
      %v356 = vsel %vm320, %v303, 0.0
      %v357 = vadd.f32 %v355, %v356
      %v358 = vsel %vm320, %v306, 0.0
      %v359 = vadd.f32 %v357, %v358
      %v360 = vsel %vm320, %v309, 0.0
      %v361 = vadd.f32 %v359, %v360
      %v362 = vsel %vm320, %v312, 0.0
      %v363 = vadd.f32 %v361, %v362
      %v364 = vsel %vm320, %v315, 0.0
      %v365 = vadd.f32 %v363, %v364
      %v366 = vsel %vm320, %v318, 0.0
      %v367 = vadd.f32 %v365, %v366
      %v368 = vrot.slane %v367, 4
      %v369 = vadd.f32 %v367, %v368
      %v370 = vrot.slane %v369, 2
      %v371 = vadd.f32 %v369, %v370
      %v372 = vrot.slane %v371, 1
      %v373 = vadd.f32 %v371, %v372
      %v374 = vmul.f32 %v273, %v273
      %v375 = vmul.f32 %v276, %v276
      %v376 = vmul.f32 %v279, %v279
      %v377 = vmul.f32 %v282, %v282
      %v378 = vmul.f32 %v285, %v285
      %v379 = vmul.f32 %v288, %v288
      %v380 = vmul.f32 %v291, %v291
      %v381 = vmul.f32 %v294, %v294
      %v382 = vmul.f32 %v297, %v297
      %v383 = vmul.f32 %v300, %v300
      %v384 = vmul.f32 %v303, %v303
      %v385 = vmul.f32 %v306, %v306
      %v386 = vmul.f32 %v309, %v309
      %v387 = vmul.f32 %v312, %v312
      %v388 = vmul.f32 %v315, %v315
      %v389 = vmul.f32 %v318, %v318
      %v390 = vsel %vm320, %v374, 0.0
      %v391 = vsel %vm320, %v375, 0.0
      %v392 = vadd.f32 %v390, %v391
      %v393 = vsel %vm320, %v376, 0.0
      %v394 = vadd.f32 %v392, %v393
      %v395 = vsel %vm320, %v377, 0.0
      %v396 = vadd.f32 %v394, %v395
      %v397 = vsel %vm320, %v378, 0.0
      %v398 = vadd.f32 %v396, %v397
      %v399 = vsel %vm320, %v379, 0.0
      %v400 = vadd.f32 %v398, %v399
      %v401 = vsel %vm320, %v380, 0.0
      %v402 = vadd.f32 %v400, %v401
      %v403 = vsel %vm320, %v381, 0.0
      %v404 = vadd.f32 %v402, %v403
      %v405 = vsel %vm320, %v382, 0.0
      %v406 = vadd.f32 %v404, %v405
      %v407 = vsel %vm320, %v383, 0.0
      %v408 = vadd.f32 %v406, %v407
      %v409 = vsel %vm320, %v384, 0.0
      %v410 = vadd.f32 %v408, %v409
      %v411 = vsel %vm320, %v385, 0.0
      %v412 = vadd.f32 %v410, %v411
      %v413 = vsel %vm320, %v386, 0.0
      %v414 = vadd.f32 %v412, %v413
      %v415 = vsel %vm320, %v387, 0.0
      %v416 = vadd.f32 %v414, %v415
      %v417 = vsel %vm320, %v388, 0.0
      %v418 = vadd.f32 %v416, %v417
      %v419 = vsel %vm320, %v389, 0.0
      %v420 = vadd.f32 %v418, %v419
      %v421 = vrot.slane %v420, 4
      %v422 = vadd.f32 %v420, %v421
      %v423 = vrot.slane %v422, 2
      %v424 = vadd.f32 %v422, %v423
      %v425 = vrot.slane %v424, 1
      %v426 = vadd.f32 %v424, %v425
      %vm427 = vcmask 1040384
      %v428 = vsel %vm427, %v373, %v426
      %vm429 = vcmask 58368
      %430 = vst.msk [vmem:[%s184] sm:$0x3] %vm429, %v428
      %s431 = smul.u32 16, %s15
      %p432 = scmp.lt.s32.totalorder %s431, 63
      %s433 = scalar_select %p432, %s431, 63
      %s434 = smul.addr %s433, 8
      %s435 = scalar_lea.vmem %s2, %s434
      %p436 = scmp.lt.s32.totalorder %s15, 3
      %s437 = scalar_select %p436, %s15, 3
      %s438 = smul.addr %s437, 2
      %s439 = scalar_lea.vmem %s3, %s438
      // Predicated region
      $region29: #{bottleneck_forward.4} parent=27 // pred_check
        %p440 = pneg %p80
      $region30: #{bottleneck_forward.4} parent=27 // pred_check_branch
        %442 = sbr.rel (%p440) target = $region32
      $region31: #{bottleneck_forward.4} parent=27 // pred_region
        %s443 = smul.u32 16, %s15
      $region32: #{bottleneck_forward.4} parent=27 // pred_fallthru
        _
      // Predicated region
      $region33: #{bottleneck_forward.4} parent=27 // pred_check
        %p444 = pneg %p106
      $region34: #{bottleneck_forward.4} parent=27 // pred_check_branch
        %446 = sbr.rel (%p444) target = $region36
      $region35: #{bottleneck_forward.4} parent=27 // pred_region
        _
      $region36: #{bottleneck_forward.4} parent=27 // pred_fallthru
        _
    $region28: #{bottleneck_forward.4} parent=5 // pred_fallthru
      _
    %p447 = scmp.le.s32.totalorder 2, %s10
    // Predicated region
    $region37: #{bottleneck_forward.4} parent=5 // pred_check
      %p448 = pneg %p447
    $region38: #{bottleneck_forward.4} parent=5 // pred_check_branch
      %450 = sbr.rel (%p448) target = $region40
    $region39: #{bottleneck_forward.4} parent=5 // pred_region
      %s451 = ssub.s32 %s10, 2
      // Predicated region
      $region41: #{bottleneck_forward.4} parent=39 // pred_check
        %p452 = pneg %p86
      $region42: #{bottleneck_forward.4} parent=39 // pred_check_branch
        %454 = sbr.rel (%p452) target = $region44
      $region43: #{bottleneck_forward.4} parent=39 // pred_region
        %s455 = smul.u32 16, %s16
        %p456 = scmp.lt.s32.totalorder %s455, 63
        %s457 = scalar_select %p456, %s455, 63
        %s458 = smul.addr %s457, 8
        %s459 = scalar_lea.vmem %s2, %s458
      $region44: #{bottleneck_forward.4} parent=39 // pred_fallthru
        _
      // Predicated region
      $region45: #{bottleneck_forward.4} parent=39 // pred_check
        %p460 = pneg %p112
      $region46: #{bottleneck_forward.4} parent=39 // pred_check_branch
        %462 = sbr.rel (%p460) target = $region48
      $region47: #{bottleneck_forward.4} parent=39 // pred_region
        %p463 = scmp.lt.s32.totalorder %s16, 3
        %s464 = scalar_select %p463, %s16, 3
        %s465 = smul.addr %s464, 2
        %s466 = scalar_lea.vmem %s3, %s465
      $region48: #{bottleneck_forward.4} parent=39 // pred_fallthru
        _
    $region40: #{bottleneck_forward.4} parent=5 // pred_fallthru
      _
  $region6: #{bottleneck_forward.4} parent=0 // loop_footer
    %s14 = sadd.s32 1, %s10
  $region7: #{bottleneck_forward.4} parent=0 // loop_footer_branch
    %9 = sbr.rel target = $region3
  $region8: #{bottleneck_forward.4} parent=0 // loop_exit
    _

// kernel: bottleneck_forward.6
$region0: #{bottleneck_forward.6}
  #allocation0 [shape = 'u32[]', space=smem, size = 0x4, offset = 0x4, fixed_abs, tag = 'smem constant byte address 0x4 - core index']
  #allocation1 [shape = 'u32[72,128]{1,0:T(1,128)}', space=vmem, size = 0x9000, scoped, tag = 'internal scratch']
  %s0 = inlined_call_operand.vmem [shape: f32[512,8], index: 0, kind: input, shape index: {}]
  %s1 = inlined_call_operand.vmem [shape: f32[1,8], index: 1, kind: input, shape index: {}]
  %s2 = inlined_call_operand.vmem [shape: f32[1,8], index: 2, kind: input, shape index: {}]
  %s3 = inlined_call_operand.vmem [shape: f32[8,8], index: 3, kind: input, shape index: {}]
  %s4 = inlined_call_operand.vmem [shape: f32[512,8], index: 4, kind: output, shape index: {0}]
  %s5 = inlined_call_operand.vmem [shape: f32[4,2,8], index: 5, kind: output, shape index: {1}]
  %6 = xla_tuple %s4, %s5
  %s7 = sld [smem:[#allocation0]]
  $region57: #{bottleneck_forward.6} parent=0
    _
  %s9 = ssub.s32 1, %s7
  %s10 = scalar_select 0, %s9, %s7
  loop: start=0, step=1, limit=6
  $region2: #{bottleneck_forward.6} parent=0 // loop_pre_header
    _
  $region3: #{bottleneck_forward.6} parent=0 // loop_header
    %s12 = sphi 0, %s16
    %p13 = scmp.ge.s32.totalorder %s12, 6
    %s22 = sphi 0, %s24
    %s25 = sphi 0, %s22
    %s26 = sphi 0, %s25
    %s42 = sphi 0, %s26
    %s46 = sphi 0, %s46
    %s48 = sphi 0, %s46
    %s49 = sphi 0, %s48
    %s63 = sphi 0, %s49
    %s67 = sphi 0, %s67
    %s69 = sphi 0, %s67
    %s70 = sphi 0, %s69
    %s84 = sphi 0, %s70
    %s88 = sphi 0, %s88
    %s90 = sphi 0, %s88
    %s91 = sphi 0, %s90
    %s105 = sphi 0, %s91
    %s111 = sphi 0, %s113
    %s114 = sphi 0, %s111
    %s115 = sphi 0, %s114
    %s131 = sphi 0, %s115
    %s137 = sphi 0, %s139
    %s140 = sphi 0, %s137
    %s141 = sphi 0, %s140
    %s157 = sphi 0, %s141
  $region4: #{bottleneck_forward.6} parent=0 // loop_header_branch
    %15 = sbr.rel (%p13) target = $region8
  $region5: #{bottleneck_forward.6} parent=0 // loop_body
    %s17 = ssub.s32 %s12, 1
    %s18 = ssub.s32 %s12, 2
    %s19 = sadd.s32 %s12, 1
    %s20 = ssub.s32 %s12, %s19
    %p21 = scmp.eq.s32.totalorder %s20, 0
    %s23 = sadd.s32 %s22, 1
    %s24 = scalar_select %p21, %s22, %s23
    %p27 = pneg %p21
    %p28 = scmp.eq.s32.totalorder %s12, 3
    %p29 = por %p27, %p28
    %p30 = scmp.ne.s32.totalorder %s22, %s25
    %p31 = scmp.eq.s32.totalorder %s12, 0
    %p32 = por %p30, %p31
    %p33 = scmp.ne.s32.totalorder %s22, %s25
    %p34 = scmp.eq.s32.totalorder %s17, 3
    %p35 = por %p33, %p34
    %p36 = scmp.ne.s32.totalorder %s25, %s26
    %p37 = scmp.eq.s32.totalorder %s17, 0
    %p38 = por %p36, %p37
    %p39 = scmp.ne.s32.totalorder %s25, %s26
    %p40 = scmp.eq.s32.totalorder %s18, 3
    %p41 = por %p39, %p40
    %p43 = scmp.ne.s32.totalorder %s26, %s42
    %p44 = scmp.eq.s32.totalorder %s18, 0
    %p45 = por %p43, %p44
    %s47 = sadd.s32 %s46, 1
    %p50 = scmp.eq.s32.totalorder %s12, 3
    %p51 = scmp.ne.s32.totalorder %s46, %s48
    %p52 = scmp.eq.s32.totalorder %s12, 0
    %p53 = por %p51, %p52
    %p54 = scmp.ne.s32.totalorder %s46, %s48
    %p55 = scmp.eq.s32.totalorder %s17, 3
    %p56 = por %p54, %p55
    %p57 = scmp.ne.s32.totalorder %s48, %s49
    %p58 = scmp.eq.s32.totalorder %s17, 0
    %p59 = por %p57, %p58
    %p60 = scmp.ne.s32.totalorder %s48, %s49
    %p61 = scmp.eq.s32.totalorder %s18, 3
    %p62 = por %p60, %p61
    %p64 = scmp.ne.s32.totalorder %s49, %s63
    %p65 = scmp.eq.s32.totalorder %s18, 0
    %p66 = por %p64, %p65
    %s68 = sadd.s32 %s67, 1
    %p71 = scmp.eq.s32.totalorder %s12, 3
    %p72 = scmp.ne.s32.totalorder %s67, %s69
    %p73 = scmp.eq.s32.totalorder %s12, 0
    %p74 = por %p72, %p73
    %p75 = scmp.ne.s32.totalorder %s67, %s69
    %p76 = scmp.eq.s32.totalorder %s17, 3
    %p77 = por %p75, %p76
    %p78 = scmp.ne.s32.totalorder %s69, %s70
    %p79 = scmp.eq.s32.totalorder %s17, 0
    %p80 = por %p78, %p79
    %p81 = scmp.ne.s32.totalorder %s69, %s70
    %p82 = scmp.eq.s32.totalorder %s18, 3
    %p83 = por %p81, %p82
    %p85 = scmp.ne.s32.totalorder %s70, %s84
    %p86 = scmp.eq.s32.totalorder %s18, 0
    %p87 = por %p85, %p86
    %s89 = sadd.s32 %s88, 1
    %p92 = scmp.eq.s32.totalorder %s12, 3
    %p93 = scmp.ne.s32.totalorder %s88, %s90
    %p94 = scmp.eq.s32.totalorder %s12, 0
    %p95 = por %p93, %p94
    %p96 = scmp.ne.s32.totalorder %s88, %s90
    %p97 = scmp.eq.s32.totalorder %s17, 3
    %p98 = por %p96, %p97
    %p99 = scmp.ne.s32.totalorder %s90, %s91
    %p100 = scmp.eq.s32.totalorder %s17, 0
    %p101 = por %p99, %p100
    %p102 = scmp.ne.s32.totalorder %s90, %s91
    %p103 = scmp.eq.s32.totalorder %s18, 3
    %p104 = por %p102, %p103
    %p106 = scmp.ne.s32.totalorder %s91, %s105
    %p107 = scmp.eq.s32.totalorder %s18, 0
    %p108 = por %p106, %p107
    %s109 = ssub.s32 %s12, %s19
    %p110 = scmp.eq.s32.totalorder %s109, 0
    %s112 = sadd.s32 %s111, 1
    %s113 = scalar_select %p110, %s111, %s112
    %p116 = pneg %p110
    %p117 = scmp.eq.s32.totalorder %s12, 3
    %p118 = por %p116, %p117
    %p119 = scmp.ne.s32.totalorder %s111, %s114
    %p120 = scmp.eq.s32.totalorder %s12, 0
    %p121 = por %p119, %p120
    %p122 = scmp.ne.s32.totalorder %s111, %s114
    %p123 = scmp.eq.s32.totalorder %s17, 3
    %p124 = por %p122, %p123
    %p125 = scmp.ne.s32.totalorder %s114, %s115
    %p126 = scmp.eq.s32.totalorder %s17, 0
    %p127 = por %p125, %p126
    %p128 = scmp.ne.s32.totalorder %s114, %s115
    %p129 = scmp.eq.s32.totalorder %s18, 3
    %p130 = por %p128, %p129
    %p132 = scmp.ne.s32.totalorder %s115, %s131
    %p133 = scmp.eq.s32.totalorder %s18, 0
    %p134 = por %p132, %p133
    %s135 = ssub.s32 %s12, %s19
    %p136 = scmp.eq.s32.totalorder %s135, 0
    %s138 = sadd.s32 %s137, 1
    %s139 = scalar_select %p136, %s137, %s138
    %p142 = pneg %p136
    %p143 = scmp.eq.s32.totalorder %s12, 3
    %p144 = por %p142, %p143
    %p145 = scmp.ne.s32.totalorder %s137, %s140
    %p146 = scmp.eq.s32.totalorder %s12, 0
    %p147 = por %p145, %p146
    %p148 = scmp.ne.s32.totalorder %s137, %s140
    %p149 = scmp.eq.s32.totalorder %s17, 3
    %p150 = por %p148, %p149
    %p151 = scmp.ne.s32.totalorder %s140, %s141
    %p152 = scmp.eq.s32.totalorder %s17, 0
    %p153 = por %p151, %p152
    %p154 = scmp.ne.s32.totalorder %s140, %s141
    %p155 = scmp.eq.s32.totalorder %s18, 3
    %p156 = por %p154, %p155
    %p158 = scmp.ne.s32.totalorder %s141, %s157
    %p159 = scmp.eq.s32.totalorder %s18, 0
    %p160 = por %p158, %p159
    %p161 = scmp.le.s32.totalorder 1, %s12
    %p162 = scmp.lt.s32.totalorder %s12, 5
    %p163 = pnand %p161, %p162
    %p164 = pneg %p163
    // Predicated region
    $region9: #{bottleneck_forward.6} parent=5 // pred_check
      _
    $region10: #{bottleneck_forward.6} parent=5 // pred_check_branch
      %166 = sbr.rel (%p163) target = $region12
    $region11: #{bottleneck_forward.6} parent=5 // pred_region
      %s167 = ssub.s32 %s12, 1
      // Predicated region
      $region13: #{bottleneck_forward.6} parent=11 // pred_check
        %p168 = pneg %p59
      $region14: #{bottleneck_forward.6} parent=11 // pred_check_branch
        %170 = sbr.rel (%p168) target = $region16
      $region15: #{bottleneck_forward.6} parent=11 // pred_region
        _
      $region16: #{bottleneck_forward.6} parent=11 // pred_fallthru
        _
      // Predicated region
      $region17: #{bottleneck_forward.6} parent=11 // pred_check
        %p171 = pneg %p80
      $region18: #{bottleneck_forward.6} parent=11 // pred_check_branch
        %173 = sbr.rel (%p171) target = $region20
      $region19: #{bottleneck_forward.6} parent=11 // pred_region
        _
      $region20: #{bottleneck_forward.6} parent=11 // pred_fallthru
        _
      // Predicated region
      $region21: #{bottleneck_forward.6} parent=11 // pred_check
        %p174 = pneg %p101
      $region22: #{bottleneck_forward.6} parent=11 // pred_check_branch
        %176 = sbr.rel (%p174) target = $region24
      $region23: #{bottleneck_forward.6} parent=11 // pred_region
        _
      $region24: #{bottleneck_forward.6} parent=11 // pred_fallthru
        _
    $region12: #{bottleneck_forward.6} parent=5 // pred_fallthru
      _
    %p177 = scmp.lt.s32.totalorder %s12, 4
    // Predicated region
    $region25: #{bottleneck_forward.6} parent=5 // pred_check
      %p178 = pneg %p177
    $region26: #{bottleneck_forward.6} parent=5 // pred_check_branch
      %180 = sbr.rel (%p178) target = $region28
    $region27: #{bottleneck_forward.6} parent=5 // pred_region
      // Predicated region
      $region29: #{bottleneck_forward.6} parent=27 // pred_check
        %p181 = pneg %p32
      $region30: #{bottleneck_forward.6} parent=27 // pred_check_branch
        %183 = sbr.rel (%p181) target = $region32
      $region31: #{bottleneck_forward.6} parent=27 // pred_region
        %s184 = smul.u32 16, %s12
        %p185 = scmp.lt.s32.totalorder %s184, 63
        %s186 = scalar_select %p185, %s184, 63
        %s187 = smul.addr %s186, 8
        %s188 = scalar_lea.vmem %s0, %s187
        %s189 = smul.u32 16, %s12
      $region32: #{bottleneck_forward.6} parent=27 // pred_fallthru
        _
    $region28: #{bottleneck_forward.6} parent=5 // pred_fallthru
      _
    %p190 = scmp.le.s32.totalorder 1, %s12
    %p191 = scmp.lt.s32.totalorder %s12, 5
    %p192 = pnand %p190, %p191
    %p193 = pneg %p192
    // Predicated region
    $region33: #{bottleneck_forward.6} parent=5 // pred_check
      _
    $region34: #{bottleneck_forward.6} parent=5 // pred_check_branch
      %195 = sbr.rel (%p192) target = $region36
    $region35: #{bottleneck_forward.6} parent=5 // pred_region
      %s196 = ssub.s32 %s12, 1
      %s197 = smul.u32 16, %s17
      %p198 = scmp.lt.s32.totalorder %s197, 63
      %s199 = scalar_select %p198, %s197, 63
      %s200 = smul.addr %s199, 8
      %s201 = scalar_lea.vmem %s0, %s200
      %p202 = pneg %p38
      %p203 = pneg %p35
      %p204 = pneg %p59
      %p205 = pneg %p56
      %p206 = pneg %p80
      %p207 = pneg %p77
      %p208 = pneg %p101
      %p209 = pneg %p98
      %p210 = pneg %p127
      %p211 = pneg %p124
      %s212 = smul.u32 16, %s17
      %p213 = scmp.lt.s32.totalorder %s212, 63
      %s214 = scalar_select %p213, %s212, 63
      %s215 = smul.addr %s214, 8
      %s216 = scalar_lea.vmem %s4, %s215
      %p217 = pneg %p153
      %p218 = pneg %p150
      %p219 = scmp.lt.s32.totalorder %s17, 3
      %s220 = scalar_select %p219, %s17, 3
      %s221 = smul.addr %s220, 2
      %s222 = scalar_lea.vmem %s5, %s221
      %s223 = smul.u32 16, %s17
      %p224 = scmp.lt.s32.totalorder %s223, 63
      %s225 = scalar_select %p224, %s223, 63
      %s226 = smul.addr %s225, 8
      %s227 = scalar_lea.vmem %s0, %s226
      %s228 = smul.u32 16, %s17
      %s229 = smul.u32 16, %s17
      %p230 = scmp.lt.s32.totalorder %s229, 63
      %s231 = scalar_select %p230, %s229, 63
      %s232 = smul.addr %s231, 8
      %s233 = scalar_lea.vmem %s4, %s232
      %s234 = smul.u32 16, %s17
      %p235 = scmp.lt.s32.totalorder %s17, 3
      %s236 = scalar_select %p235, %s17, 3
      %s237 = smul.addr %s236, 2
      %s238 = scalar_lea.vmem %s5, %s237
      %v239 = vld [vmem:[%s227] sm:$0xff]
      %v240 = vld [vmem:[%s227 + $0x8] sm:$0xff]
      %v241 = vld [vmem:[%s227 + $0x10] sm:$0xff]
      %v242 = vld [vmem:[%s227 + $0x18] sm:$0xff]
      %v243 = vld [vmem:[%s227 + $0x20] sm:$0xff]
      %v244 = vld [vmem:[%s227 + $0x28] sm:$0xff]
      %v245 = vld [vmem:[%s227 + $0x30] sm:$0xff]
      %v246 = vld [vmem:[%s227 + $0x38] sm:$0xff]
      %v247 = vld [vmem:[%s227 + $0x40] sm:$0xff]
      %v248 = vld [vmem:[%s227 + $0x48] sm:$0xff]
      %v249 = vld [vmem:[%s227 + $0x50] sm:$0xff]
      %v250 = vld [vmem:[%s227 + $0x58] sm:$0xff]
      %v251 = vld [vmem:[%s227 + $0x60] sm:$0xff]
      %v252 = vld [vmem:[%s227 + $0x68] sm:$0xff]
      %v253 = vld [vmem:[%s227 + $0x70] sm:$0xff]
      %v254 = vld [vmem:[%s227 + $0x78] sm:$0xff]
      %v255 = vld [vmem:[%s1] sm:$0x1]
      %v257 = vperm.slane %v255, 0
      %v259 = vmul.f32 %v239, %v257
      %v260 = vmul.f32 %v240, %v257
      %v261 = vmul.f32 %v241, %v257
      %v262 = vmul.f32 %v242, %v257
      %v263 = vmul.f32 %v243, %v257
      %v264 = vmul.f32 %v244, %v257
      %v265 = vmul.f32 %v245, %v257
      %v266 = vmul.f32 %v246, %v257
      %v267 = vmul.f32 %v247, %v257
      %v268 = vmul.f32 %v248, %v257
      %v269 = vmul.f32 %v249, %v257
      %v270 = vmul.f32 %v250, %v257
      %v271 = vmul.f32 %v251, %v257
      %v272 = vmul.f32 %v252, %v257
      %v273 = vmul.f32 %v253, %v257
      %v274 = vmul.f32 %v254, %v257
      %v275 = vld [vmem:[%s2] sm:$0x1]
      %v277 = vperm.slane %v275, 0
      %v279 = vadd.f32 %v259, %v277
      %v280 = vadd.f32 %v260, %v277
      %v281 = vadd.f32 %v261, %v277
      %v282 = vadd.f32 %v262, %v277
      %v283 = vadd.f32 %v263, %v277
      %v284 = vadd.f32 %v264, %v277
      %v285 = vadd.f32 %v265, %v277
      %v286 = vadd.f32 %v266, %v277
      %v287 = vadd.f32 %v267, %v277
      %v288 = vadd.f32 %v268, %v277
      %v289 = vadd.f32 %v269, %v277
      %v290 = vadd.f32 %v270, %v277
      %v291 = vadd.f32 %v271, %v277
      %v292 = vadd.f32 %v272, %v277
      %v293 = vadd.f32 %v273, %v277
      %v294 = vadd.f32 %v274, %v277
      %v295 = vmax.f32 %v279, 0.0
      %v296 = vmax.f32 %v280, 0.0
      %v297 = vmax.f32 %v281, 0.0
      %v298 = vmax.f32 %v282, 0.0
      %v299 = vmax.f32 %v283, 0.0
      %v300 = vmax.f32 %v284, 0.0
      %v301 = vmax.f32 %v285, 0.0
      %v302 = vmax.f32 %v286, 0.0
      %v303 = vmax.f32 %v287, 0.0
      %v304 = vmax.f32 %v288, 0.0
      %v305 = vmax.f32 %v289, 0.0
      %v306 = vmax.f32 %v290, 0.0
      %v307 = vmax.f32 %v291, 0.0
      %v308 = vmax.f32 %v292, 0.0
      %v309 = vmax.f32 %v293, 0.0
      %v310 = vmax.f32 %v294, 0.0
      %v311 = vld [vmem:[%s3] sm:$0xff]
      %vm312 = vcmask 64512
      %v314 = vsel %vm312, %v295, 0
      %v317 = vsel %vm312, %v296, 0
      %v320 = vsel %vm312, %v297, 0
      %v323 = vsel %vm312, %v298, 0
      %v326 = vsel %vm312, %v299, 0
      %v329 = vsel %vm312, %v300, 0
      %v332 = vsel %vm312, %v301, 0
      %v335 = vsel %vm312, %v302, 0
      %v338 = vsel %vm312, %v303, 0
      %v341 = vsel %vm312, %v304, 0
      %v344 = vsel %vm312, %v305, 0
      %v347 = vsel %vm312, %v306, 0
      %v350 = vsel %vm312, %v307, 0
      %v353 = vsel %vm312, %v308, 0
      %v356 = vsel %vm312, %v309, 0
      %v359 = vsel %vm312, %v310, 0
      %361 = vmatpush.msra.mxu0 0.0
      %362 = vmatpush.msra.mxu0 0.0
      %363 = vmatpush.msra.mxu0 0.0
      %364 = vmatpush.msra.mxu0 0.0
      %365 = vmatpush.msra.mxu0 0.0
      %366 = vmatpush.msra.mxu0 0.0
      %367 = vmatpush.msra.mxu0 0.0
      %368 = vmatpush.msra.mxu0 0.0
      %369 = vmatpush.msra.mxu0 0.0
      %370 = vmatpush.msra.mxu0 0.0
      %371 = vmatpush.msra.mxu0 0.0
      %372 = vmatpush.msra.mxu0 0.0
      %373 = vmatpush.msra.mxu0 0.0
      %374 = vmatpush.msra.mxu0 0.0
      %375 = vmatpush.msra.mxu0 0.0
      %376 = vmatpush.msra.mxu0 %v311
      %377 = vmatmul.f32.gmra.mxu0 %v314
      %v378 = vpop.f32.mrf.mxu0
      %v379 = vadd.f32 0.0, %v378
      %380 = vmatmul.f32.gmra.mxu0 %v317
      %v381 = vpop.f32.mrf.mxu0
      %v382 = vadd.f32 0.0, %v381
      %383 = vmatmul.f32.gmra.mxu0 %v320
      %v384 = vpop.f32.mrf.mxu0
      %v385 = vadd.f32 0.0, %v384
      %386 = vmatmul.f32.gmra.mxu0 %v323
      %v387 = vpop.f32.mrf.mxu0
      %v388 = vadd.f32 0.0, %v387
      %389 = vmatmul.f32.gmra.mxu0 %v326
      %v390 = vpop.f32.mrf.mxu0
      %v391 = vadd.f32 0.0, %v390
      %392 = vmatmul.f32.gmra.mxu0 %v329
      %v393 = vpop.f32.mrf.mxu0
      %v394 = vadd.f32 0.0, %v393
      %395 = vmatmul.f32.gmra.mxu0 %v332
      %v396 = vpop.f32.mrf.mxu0
      %v397 = vadd.f32 0.0, %v396
      %398 = vmatmul.f32.gmra.mxu0 %v335
      %v399 = vpop.f32.mrf.mxu0
      %v400 = vadd.f32 0.0, %v399
      %401 = vmatmul.f32.gmra.mxu0 %v338
      %v402 = vpop.f32.mrf.mxu0
      %v403 = vadd.f32 0.0, %v402
      %404 = vmatmul.f32.gmra.mxu0 %v341
      %v405 = vpop.f32.mrf.mxu0
      %v406 = vadd.f32 0.0, %v405
      %407 = vmatmul.f32.gmra.mxu0 %v344
      %v408 = vpop.f32.mrf.mxu0
      %v409 = vadd.f32 0.0, %v408
      %410 = vmatmul.f32.gmra.mxu0 %v347
      %v411 = vpop.f32.mrf.mxu0
      %v412 = vadd.f32 0.0, %v411
      %413 = vmatmul.f32.gmra.mxu0 %v350
      %v414 = vpop.f32.mrf.mxu0
      %v415 = vadd.f32 0.0, %v414
      %416 = vmatmul.f32.gmra.mxu0 %v353
      %v417 = vpop.f32.mrf.mxu0
      %v418 = vadd.f32 0.0, %v417
      %419 = vmatmul.f32.gmra.mxu0 %v356
      %v420 = vpop.f32.mrf.mxu0
      %v421 = vadd.f32 0.0, %v420
      %422 = vmatmul.f32.gmra.mxu0 %v359
      %v423 = vpop.f32.mrf.mxu0
      %v424 = vadd.f32 0.0, %v423
      %425 = vdwg.mxu0
      %426 = vst.msk [vmem:[%s233] sm:$0xff] %vm312, %v379
      %427 = vst.msk [vmem:[%s233 + $0x8] sm:$0xff] %vm312, %v382
      %428 = vst.msk [vmem:[%s233 + $0x10] sm:$0xff] %vm312, %v385
      %429 = vst.msk [vmem:[%s233 + $0x18] sm:$0xff] %vm312, %v388
      %430 = vst.msk [vmem:[%s233 + $0x20] sm:$0xff] %vm312, %v391
      %431 = vst.msk [vmem:[%s233 + $0x28] sm:$0xff] %vm312, %v394
      %432 = vst.msk [vmem:[%s233 + $0x30] sm:$0xff] %vm312, %v397
      %433 = vst.msk [vmem:[%s233 + $0x38] sm:$0xff] %vm312, %v400
      %434 = vst.msk [vmem:[%s233 + $0x40] sm:$0xff] %vm312, %v403
      %435 = vst.msk [vmem:[%s233 + $0x48] sm:$0xff] %vm312, %v406
      %436 = vst.msk [vmem:[%s233 + $0x50] sm:$0xff] %vm312, %v409
      %437 = vst.msk [vmem:[%s233 + $0x58] sm:$0xff] %vm312, %v412
      %438 = vst.msk [vmem:[%s233 + $0x60] sm:$0xff] %vm312, %v415
      %439 = vst.msk [vmem:[%s233 + $0x68] sm:$0xff] %vm312, %v418
      %440 = vst.msk [vmem:[%s233 + $0x70] sm:$0xff] %vm312, %v421
      %441 = vst.msk [vmem:[%s233 + $0x78] sm:$0xff] %vm312, %v424
      %v442 = vsel %vm312, %v379, 0.0
      %v443 = vsel %vm312, %v382, 0.0
      %v444 = vadd.f32 %v442, %v443
      %v445 = vsel %vm312, %v385, 0.0
      %v446 = vadd.f32 %v444, %v445
      %v447 = vsel %vm312, %v388, 0.0
      %v448 = vadd.f32 %v446, %v447
      %v449 = vsel %vm312, %v391, 0.0
      %v450 = vadd.f32 %v448, %v449
      %v451 = vsel %vm312, %v394, 0.0
      %v452 = vadd.f32 %v450, %v451
      %v453 = vsel %vm312, %v397, 0.0
      %v454 = vadd.f32 %v452, %v453
      %v455 = vsel %vm312, %v400, 0.0
      %v456 = vadd.f32 %v454, %v455
      %v457 = vsel %vm312, %v403, 0.0
      %v458 = vadd.f32 %v456, %v457
      %v459 = vsel %vm312, %v406, 0.0
      %v460 = vadd.f32 %v458, %v459
      %v461 = vsel %vm312, %v409, 0.0
      %v462 = vadd.f32 %v460, %v461
      %v463 = vsel %vm312, %v412, 0.0
      %v464 = vadd.f32 %v462, %v463
      %v465 = vsel %vm312, %v415, 0.0
      %v466 = vadd.f32 %v464, %v465
      %v467 = vsel %vm312, %v418, 0.0
      %v468 = vadd.f32 %v466, %v467
      %v469 = vsel %vm312, %v421, 0.0
      %v470 = vadd.f32 %v468, %v469
      %v471 = vsel %vm312, %v424, 0.0
      %v472 = vadd.f32 %v470, %v471
      %v473 = vrot.slane %v472, 4
      %v474 = vadd.f32 %v472, %v473
      %v475 = vrot.slane %v474, 2
      %v476 = vadd.f32 %v474, %v475
      %v477 = vrot.slane %v476, 1
      %v478 = vadd.f32 %v476, %v477
      %v479 = vmul.f32 %v379, %v379
      %v480 = vmul.f32 %v382, %v382
      %v481 = vmul.f32 %v385, %v385
      %v482 = vmul.f32 %v388, %v388
      %v483 = vmul.f32 %v391, %v391
      %v484 = vmul.f32 %v394, %v394
      %v485 = vmul.f32 %v397, %v397
      %v486 = vmul.f32 %v400, %v400
      %v487 = vmul.f32 %v403, %v403
      %v488 = vmul.f32 %v406, %v406
      %v489 = vmul.f32 %v409, %v409
      %v490 = vmul.f32 %v412, %v412
      %v491 = vmul.f32 %v415, %v415
      %v492 = vmul.f32 %v418, %v418
      %v493 = vmul.f32 %v421, %v421
      %v494 = vmul.f32 %v424, %v424
      %v495 = vsel %vm312, %v479, 0.0
      %v496 = vsel %vm312, %v480, 0.0
      %v497 = vadd.f32 %v495, %v496
      %v498 = vsel %vm312, %v481, 0.0
      %v499 = vadd.f32 %v497, %v498
      %v500 = vsel %vm312, %v482, 0.0
      %v501 = vadd.f32 %v499, %v500
      %v502 = vsel %vm312, %v483, 0.0
      %v503 = vadd.f32 %v501, %v502
      %v504 = vsel %vm312, %v484, 0.0
      %v505 = vadd.f32 %v503, %v504
      %v506 = vsel %vm312, %v485, 0.0
      %v507 = vadd.f32 %v505, %v506
      %v508 = vsel %vm312, %v486, 0.0
      %v509 = vadd.f32 %v507, %v508
      %v510 = vsel %vm312, %v487, 0.0
      %v511 = vadd.f32 %v509, %v510
      %v512 = vsel %vm312, %v488, 0.0
      %v513 = vadd.f32 %v511, %v512
      %v514 = vsel %vm312, %v489, 0.0
      %v515 = vadd.f32 %v513, %v514
      %v516 = vsel %vm312, %v490, 0.0
      %v517 = vadd.f32 %v515, %v516
      %v518 = vsel %vm312, %v491, 0.0
      %v519 = vadd.f32 %v517, %v518
      %v520 = vsel %vm312, %v492, 0.0
      %v521 = vadd.f32 %v519, %v520
      %v522 = vsel %vm312, %v493, 0.0
      %v523 = vadd.f32 %v521, %v522
      %v524 = vsel %vm312, %v494, 0.0
      %v525 = vadd.f32 %v523, %v524
      %v526 = vrot.slane %v525, 4
      %v527 = vadd.f32 %v525, %v526
      %v528 = vrot.slane %v527, 2
      %v529 = vadd.f32 %v527, %v528
      %v530 = vrot.slane %v529, 1
      %v531 = vadd.f32 %v529, %v530
      %vm532 = vcmask 1040384
      %v533 = vsel %vm532, %v478, %v531
      %vm534 = vcmask 58368
      %535 = vst.msk [vmem:[%s238] sm:$0x3] %vm534, %v533
      %s536 = smul.u32 16, %s17
      %p537 = scmp.lt.s32.totalorder %s536, 63
      %s538 = scalar_select %p537, %s536, 63
      %s539 = smul.addr %s538, 8
      %s540 = scalar_lea.vmem %s4, %s539
      %p541 = scmp.lt.s32.totalorder %s17, 3
      %s542 = scalar_select %p541, %s17, 3
      %s543 = smul.addr %s542, 2
      %s544 = scalar_lea.vmem %s5, %s543
      // Predicated region
      $region37: #{bottleneck_forward.6} parent=35 // pred_check
        %p545 = pneg %p124
      $region38: #{bottleneck_forward.6} parent=35 // pred_check_branch
        %547 = sbr.rel (%p545) target = $region40
      $region39: #{bottleneck_forward.6} parent=35 // pred_region
        %s548 = smul.u32 16, %s17
      $region40: #{bottleneck_forward.6} parent=35 // pred_fallthru
        _
      // Predicated region
      $region41: #{bottleneck_forward.6} parent=35 // pred_check
        %p549 = pneg %p150
      $region42: #{bottleneck_forward.6} parent=35 // pred_check_branch
        %551 = sbr.rel (%p549) target = $region44
      $region43: #{bottleneck_forward.6} parent=35 // pred_region
        _
      $region44: #{bottleneck_forward.6} parent=35 // pred_fallthru
        _
    $region36: #{bottleneck_forward.6} parent=5 // pred_fallthru
      _
    %p552 = scmp.le.s32.totalorder 2, %s12
    // Predicated region
    $region45: #{bottleneck_forward.6} parent=5 // pred_check
      %p553 = pneg %p552
    $region46: #{bottleneck_forward.6} parent=5 // pred_check_branch
      %555 = sbr.rel (%p553) target = $region48
    $region47: #{bottleneck_forward.6} parent=5 // pred_region
      %s556 = ssub.s32 %s12, 2
      // Predicated region
      $region49: #{bottleneck_forward.6} parent=47 // pred_check
        %p557 = pneg %p130
      $region50: #{bottleneck_forward.6} parent=47 // pred_check_branch
        %559 = sbr.rel (%p557) target = $region52
      $region51: #{bottleneck_forward.6} parent=47 // pred_region
        %s560 = smul.u32 16, %s18
        %p561 = scmp.lt.s32.totalorder %s560, 63
        %s562 = scalar_select %p561, %s560, 63
        %s563 = smul.addr %s562, 8
        %s564 = scalar_lea.vmem %s4, %s563
      $region52: #{bottleneck_forward.6} parent=47 // pred_fallthru
        _
      // Predicated region
      $region53: #{bottleneck_forward.6} parent=47 // pred_check
        %p565 = pneg %p156
      $region54: #{bottleneck_forward.6} parent=47 // pred_check_branch
        %567 = sbr.rel (%p565) target = $region56
      $region55: #{bottleneck_forward.6} parent=47 // pred_region
        %p568 = scmp.lt.s32.totalorder %s18, 3
        %s569 = scalar_select %p568, %s18, 3
        %s570 = smul.addr %s569, 2
        %s571 = scalar_lea.vmem %s5, %s570
      $region56: #{bottleneck_forward.6} parent=47 // pred_fallthru
        _
    $region48: #{bottleneck_forward.6} parent=5 // pred_fallthru
      _
  $region6: #{bottleneck_forward.6} parent=0 // loop_footer
    %s16 = sadd.s32 1, %s12
  $region7: #{bottleneck_forward.6} parent=0 // loop_footer_branch
    %11 = sbr.rel target = $region3
  $region8: #{bottleneck_forward.6} parent=0 // loop_exit
    _

// kernel: bottleneck_forward.5
$region0: #{bottleneck_forward.5}
  #allocation0 [shape = 'u32[]', space=smem, size = 0x4, offset = 0x4, fixed_abs, tag = 'smem constant byte address 0x4 - core index']
  #allocation1 [shape = 'u32[72,128]{1,0:T(1,128)}', space=vmem, size = 0x9000, scoped, tag = 'internal scratch']
  #allocation2 [shape = 'f32[6,16,24]{2,1,0:T(8,128)}', space=vmem, size = 0xc000, scoped, tag = 'scratch operand']
  %s0 = inlined_call_operand.vmem [shape: f32[2,16,16,8], index: 0, kind: input, shape index: {}]
  %s1 = inlined_call_operand.vmem [shape: f32[1,8], index: 1, kind: input, shape index: {}]
  %s2 = inlined_call_operand.vmem [shape: f32[1,8], index: 2, kind: input, shape index: {}]
  %s3 = inlined_call_operand.vmem [shape: f32[3,24,8], index: 3, kind: input, shape index: {}]
  %s4 = inlined_call_operand.vmem [shape: f32[2,16,16,8], index: 4, kind: output, shape index: {0}]
  %s5 = inlined_call_operand.vmem [shape: f32[2,4,2,8], index: 5, kind: output, shape index: {1}]
  %6 = xla_tuple %s4, %s5
  %s7 = sld [smem:[#allocation0]]
  $region57: #{bottleneck_forward.5} parent=0
    _
  %s9 = ssub.s32 1, %s7
  %s10 = scalar_select 0, %s9, %s7
  loop: start=0, step=1, limit=10
  $region2: #{bottleneck_forward.5} parent=0 // loop_pre_header
    _
  $region3: #{bottleneck_forward.5} parent=0 // loop_header
    %s12 = sphi 0, %s16
    %p13 = scmp.ge.s32.totalorder %s12, 10
    %s19 = sphi 0, %s31
    %s20 = sphi 0, %s27
    %s21 = sphi 0, %s19
    %s22 = sphi 0, %s20
    %s23 = sphi 0, %s21
    %s24 = sphi 0, %s22
    %s34 = sphi 0, %s36
    %s37 = sphi 0, %s34
    %s38 = sphi 0, %s37
    %s54 = sphi 0, %s38
    %s58 = sphi 0, %s58
    %s60 = sphi 0, %s58
    %s61 = sphi 0, %s60
    %s75 = sphi 0, %s61
    %s79 = sphi 0, %s79
    %s81 = sphi 0, %s79
    %s82 = sphi 0, %s81
    %s96 = sphi 0, %s82
    %s100 = sphi 0, %s100
    %s102 = sphi 0, %s100
    %s103 = sphi 0, %s102
    %s117 = sphi 0, %s103
    %s125 = sphi 0, %s127
    %s128 = sphi 0, %s125
    %s129 = sphi 0, %s128
    %s145 = sphi 0, %s129
    %s153 = sphi 0, %s155
    %s156 = sphi 0, %s153
    %s157 = sphi 0, %s156
    %s173 = sphi 0, %s157
  $region4: #{bottleneck_forward.5} parent=0 // loop_header_branch
    %15 = sbr.rel (%p13) target = $region8
  $region5: #{bottleneck_forward.5} parent=0 // loop_body
    %s17 = ssub.s32 %s12, 1
    %s18 = ssub.s32 %s12, 2
    %s25 = sadd.s32 1, %s20
    %p26 = scmp.ge.s32.totalorder %s25, 4
    %s27 = scalar_select %p26, 0, %s25
    %s28 = sadd.s32 1, %s19
    %s29 = scalar_select %p26, %s28, %s19
    %p30 = scmp.ge.s32.totalorder %s29, 2
    %s31 = scalar_select %p30, 0, %s29
    %s32 = ssub.s32 %s19, %s31
    %p33 = scmp.eq.s32.totalorder %s32, 0
    %s35 = sadd.s32 %s34, 1
    %s36 = scalar_select %p33, %s34, %s35
    %p39 = pneg %p33
    %p40 = scmp.eq.s32.totalorder %s12, 7
    %p41 = por %p39, %p40
    %p42 = scmp.ne.s32.totalorder %s34, %s37
    %p43 = scmp.eq.s32.totalorder %s12, 0
    %p44 = por %p42, %p43
    %p45 = scmp.ne.s32.totalorder %s34, %s37
    %p46 = scmp.eq.s32.totalorder %s17, 7
    %p47 = por %p45, %p46
    %p48 = scmp.ne.s32.totalorder %s37, %s38
    %p49 = scmp.eq.s32.totalorder %s17, 0
    %p50 = por %p48, %p49
    %p51 = scmp.ne.s32.totalorder %s37, %s38
    %p52 = scmp.eq.s32.totalorder %s18, 7
    %p53 = por %p51, %p52
    %p55 = scmp.ne.s32.totalorder %s38, %s54
    %p56 = scmp.eq.s32.totalorder %s18, 0
    %p57 = por %p55, %p56
    %s59 = sadd.s32 %s58, 1
    %p62 = scmp.eq.s32.totalorder %s12, 7
    %p63 = scmp.ne.s32.totalorder %s58, %s60
    %p64 = scmp.eq.s32.totalorder %s12, 0
    %p65 = por %p63, %p64
    %p66 = scmp.ne.s32.totalorder %s58, %s60
    %p67 = scmp.eq.s32.totalorder %s17, 7
    %p68 = por %p66, %p67
    %p69 = scmp.ne.s32.totalorder %s60, %s61
    %p70 = scmp.eq.s32.totalorder %s17, 0
    %p71 = por %p69, %p70
    %p72 = scmp.ne.s32.totalorder %s60, %s61
    %p73 = scmp.eq.s32.totalorder %s18, 7
    %p74 = por %p72, %p73
    %p76 = scmp.ne.s32.totalorder %s61, %s75
    %p77 = scmp.eq.s32.totalorder %s18, 0
    %p78 = por %p76, %p77
    %s80 = sadd.s32 %s79, 1
    %p83 = scmp.eq.s32.totalorder %s12, 7
    %p84 = scmp.ne.s32.totalorder %s79, %s81
    %p85 = scmp.eq.s32.totalorder %s12, 0
    %p86 = por %p84, %p85
    %p87 = scmp.ne.s32.totalorder %s79, %s81
    %p88 = scmp.eq.s32.totalorder %s17, 7
    %p89 = por %p87, %p88
    %p90 = scmp.ne.s32.totalorder %s81, %s82
    %p91 = scmp.eq.s32.totalorder %s17, 0
    %p92 = por %p90, %p91
    %p93 = scmp.ne.s32.totalorder %s81, %s82
    %p94 = scmp.eq.s32.totalorder %s18, 7
    %p95 = por %p93, %p94
    %p97 = scmp.ne.s32.totalorder %s82, %s96
    %p98 = scmp.eq.s32.totalorder %s18, 0
    %p99 = por %p97, %p98
    %s101 = sadd.s32 %s100, 1
    %p104 = scmp.eq.s32.totalorder %s12, 7
    %p105 = scmp.ne.s32.totalorder %s100, %s102
    %p106 = scmp.eq.s32.totalorder %s12, 0
    %p107 = por %p105, %p106
    %p108 = scmp.ne.s32.totalorder %s100, %s102
    %p109 = scmp.eq.s32.totalorder %s17, 7
    %p110 = por %p108, %p109
    %p111 = scmp.ne.s32.totalorder %s102, %s103
    %p112 = scmp.eq.s32.totalorder %s17, 0
    %p113 = por %p111, %p112
    %p114 = scmp.ne.s32.totalorder %s102, %s103
    %p115 = scmp.eq.s32.totalorder %s18, 7
    %p116 = por %p114, %p115
    %p118 = scmp.ne.s32.totalorder %s103, %s117
    %p119 = scmp.eq.s32.totalorder %s18, 0
    %p120 = por %p118, %p119
    %s121 = ssub.s32 %s19, %s31
    %s122 = ssub.s32 %s20, %s27
    %s123 = sor.u32 %s121, %s122
    %p124 = scmp.eq.s32.totalorder %s123, 0
    %s126 = sadd.s32 %s125, 1
    %s127 = scalar_select %p124, %s125, %s126
    %p130 = pneg %p124
    %p131 = scmp.eq.s32.totalorder %s12, 7
    %p132 = por %p130, %p131
    %p133 = scmp.ne.s32.totalorder %s125, %s128
    %p134 = scmp.eq.s32.totalorder %s12, 0
    %p135 = por %p133, %p134
    %p136 = scmp.ne.s32.totalorder %s125, %s128
    %p137 = scmp.eq.s32.totalorder %s17, 7
    %p138 = por %p136, %p137
    %p139 = scmp.ne.s32.totalorder %s128, %s129
    %p140 = scmp.eq.s32.totalorder %s17, 0
    %p141 = por %p139, %p140
    %p142 = scmp.ne.s32.totalorder %s128, %s129
    %p143 = scmp.eq.s32.totalorder %s18, 7
    %p144 = por %p142, %p143
    %p146 = scmp.ne.s32.totalorder %s129, %s145
    %p147 = scmp.eq.s32.totalorder %s18, 0
    %p148 = por %p146, %p147
    %s149 = ssub.s32 %s19, %s31
    %s150 = ssub.s32 %s20, %s27
    %s151 = sor.u32 %s149, %s150
    %p152 = scmp.eq.s32.totalorder %s151, 0
    %s154 = sadd.s32 %s153, 1
    %s155 = scalar_select %p152, %s153, %s154
    %p158 = pneg %p152
    %p159 = scmp.eq.s32.totalorder %s12, 7
    %p160 = por %p158, %p159
    %p161 = scmp.ne.s32.totalorder %s153, %s156
    %p162 = scmp.eq.s32.totalorder %s12, 0
    %p163 = por %p161, %p162
    %p164 = scmp.ne.s32.totalorder %s153, %s156
    %p165 = scmp.eq.s32.totalorder %s17, 7
    %p166 = por %p164, %p165
    %p167 = scmp.ne.s32.totalorder %s156, %s157
    %p168 = scmp.eq.s32.totalorder %s17, 0
    %p169 = por %p167, %p168
    %p170 = scmp.ne.s32.totalorder %s156, %s157
    %p171 = scmp.eq.s32.totalorder %s18, 7
    %p172 = por %p170, %p171
    %p174 = scmp.ne.s32.totalorder %s157, %s173
    %p175 = scmp.eq.s32.totalorder %s18, 0
    %p176 = por %p174, %p175
    %p177 = scmp.le.s32.totalorder 1, %s12
    %p178 = scmp.lt.s32.totalorder %s12, 9
    %p179 = pnand %p177, %p178
    %p180 = pneg %p179
    // Predicated region
    $region9: #{bottleneck_forward.5} parent=5 // pred_check
      _
    $region10: #{bottleneck_forward.5} parent=5 // pred_check_branch
      %182 = sbr.rel (%p179) target = $region12
    $region11: #{bottleneck_forward.5} parent=5 // pred_region
      %s183 = ssub.s32 %s12, 1
      // Predicated region
      $region13: #{bottleneck_forward.5} parent=11 // pred_check
        %p184 = pneg %p71
      $region14: #{bottleneck_forward.5} parent=11 // pred_check_branch
        %186 = sbr.rel (%p184) target = $region16
      $region15: #{bottleneck_forward.5} parent=11 // pred_region
        _
      $region16: #{bottleneck_forward.5} parent=11 // pred_fallthru
        _
      // Predicated region
      $region17: #{bottleneck_forward.5} parent=11 // pred_check
        %p187 = pneg %p92
      $region18: #{bottleneck_forward.5} parent=11 // pred_check_branch
        %189 = sbr.rel (%p187) target = $region20
      $region19: #{bottleneck_forward.5} parent=11 // pred_region
        _
      $region20: #{bottleneck_forward.5} parent=11 // pred_fallthru
        _
      // Predicated region
      $region21: #{bottleneck_forward.5} parent=11 // pred_check
        %p190 = pneg %p113
      $region22: #{bottleneck_forward.5} parent=11 // pred_check_branch
        %192 = sbr.rel (%p190) target = $region24
      $region23: #{bottleneck_forward.5} parent=11 // pred_region
        _
      $region24: #{bottleneck_forward.5} parent=11 // pred_fallthru
        _
    $region12: #{bottleneck_forward.5} parent=5 // pred_fallthru
      _
    %p193 = scmp.lt.s32.totalorder %s12, 8
    // Predicated region
    $region25: #{bottleneck_forward.5} parent=5 // pred_check
      %p194 = pneg %p193
    $region26: #{bottleneck_forward.5} parent=5 // pred_check_branch
      %196 = sbr.rel (%p194) target = $region28
    $region27: #{bottleneck_forward.5} parent=5 // pred_region
      // Predicated region
      $region29: #{bottleneck_forward.5} parent=27 // pred_check
        %p197 = pneg %p44
      $region30: #{bottleneck_forward.5} parent=27 // pred_check_branch
        %199 = sbr.rel (%p197) target = $region32
      $region31: #{bottleneck_forward.5} parent=27 // pred_region
        %p200 = scmp.lt.s32.totalorder %s19, 1
        %s201 = scalar_select %p200, %s19, 1
        %s202 = smul.addr %s201, 32
        %s203 = smul.addr %s202, 8
        %s204 = scalar_lea.vmem %s0, %s203
      $region32: #{bottleneck_forward.5} parent=27 // pred_fallthru
        _
    $region28: #{bottleneck_forward.5} parent=5 // pred_fallthru
      _
    %p205 = scmp.le.s32.totalorder 1, %s12
    %p206 = scmp.lt.s32.totalorder %s12, 9
    %p207 = pnand %p205, %p206
    %p208 = pneg %p207
    // Predicated region
    $region33: #{bottleneck_forward.5} parent=5 // pred_check
      _
    $region34: #{bottleneck_forward.5} parent=5 // pred_check_branch
      %210 = sbr.rel (%p207) target = $region36
    $region35: #{bottleneck_forward.5} parent=5 // pred_region
      %s211 = ssub.s32 %s12, 1
      %p212 = scmp.lt.s32.totalorder %s21, 1
      %s213 = scalar_select %p212, %s21, 1
      %s214 = smul.addr %s213, 32
      %s215 = smul.addr %s214, 8
      %s216 = scalar_lea.vmem %s0, %s215
      %p217 = pneg %p50
      %p218 = pneg %p47
      %p219 = pneg %p71
      %p220 = pneg %p68
      %p221 = pneg %p92
      %p222 = pneg %p89
      %p223 = pneg %p113
      %p224 = pneg %p110
      %p225 = pneg %p141
      %p226 = pneg %p138
      %s227 = smul.u32 4, %s22
      %p228 = scmp.lt.s32.totalorder %s21, 1
      %s229 = scalar_select %p228, %s21, 1
      %p230 = scmp.lt.s32.totalorder %s227, 15
      %s231 = scalar_select %p230, %s227, 15
      %s232 = smul.addr %s231, 2
      %s233 = smul.addr %s229, 32
      %s234 = sadd.s32 %s232, %s233
      %s235 = smul.addr %s234, 8
      %s236 = scalar_lea.vmem %s4, %s235
      %p237 = pneg %p169
      %p238 = pneg %p166
      %p239 = scmp.lt.s32.totalorder %s21, 1
      %s240 = scalar_select %p239, %s21, 1
      %p241 = scmp.lt.s32.totalorder %s22, 3
      %s242 = scalar_select %p241, %s22, 3
      %s243 = smul.addr %s240, 4
      %s244 = sadd.s32 %s242, %s243
      %s245 = smul.addr %s244, 2
      %s246 = scalar_lea.vmem %s5, %s245
      %p247 = scmp.lt.s32.totalorder %s21, 1
      %s248 = scalar_select %p247, %s21, 1
      %s249 = smul.addr %s248, 32
      %s250 = smul.addr %s249, 8
      %s251 = scalar_lea.vmem %s0, %s250
      %s252 = smul.u32 4, %s22
      %p253 = scmp.lt.s32.totalorder %s21, 1
      %s254 = scalar_select %p253, %s21, 1
      %p255 = scmp.lt.s32.totalorder %s252, 15
      %s256 = scalar_select %p255, %s252, 15
      %s257 = smul.addr %s256, 2
      %s258 = smul.addr %s254, 32
      %s259 = sadd.s32 %s257, %s258
      %s260 = smul.addr %s259, 8
      %s261 = scalar_lea.vmem %s4, %s260
      %s262 = smul.u32 4, %s22
      %p263 = scmp.lt.s32.totalorder %s21, 1
      %s264 = scalar_select %p263, %s21, 1
      %p265 = scmp.lt.s32.totalorder %s22, 3
      %s266 = scalar_select %p265, %s22, 3
      %s267 = smul.addr %s264, 4
      %s268 = sadd.s32 %s266, %s267
      %s269 = smul.addr %s268, 2
      %s270 = scalar_lea.vmem %s5, %s269
      %s271 = smul.u32 %s22, 4
      %s272 = ssub.s32 %s271, 1
      %p273 = scmp.gt.s32.totalorder %s272, 0
      %s274 = scalar_select %p273, %s272, 0
      %s275 = sadd.s32 %s271, 4
      %p276 = scmp.lt.s32.totalorder %s275, 15
      %s277 = scalar_select %p276, %s275, 15
      %s278 = smul.u32 %s274, 16
      %s279 = scalar_lea.vmem %s251, %s278
      %v280 = vld [vmem:[%s279] sm:$0xff]
      %v281 = vld [vmem:[%s279 + $0x8] sm:$0xff]
      %s282 = smul.u32 %s271, 16
      %s283 = scalar_lea.vmem %s251, %s282
      %v284 = vld [vmem:[%s283] sm:$0xff]
      %v285 = vld [vmem:[%s283 + $0x8] sm:$0xff]
      %v286 = vld [vmem:[%s283 + $0x10] sm:$0xff]
      %v287 = vld [vmem:[%s283 + $0x18] sm:$0xff]
      %v288 = vld [vmem:[%s283 + $0x20] sm:$0xff]
      %v289 = vld [vmem:[%s283 + $0x28] sm:$0xff]
      %v290 = vld [vmem:[%s283 + $0x30] sm:$0xff]
      %v291 = vld [vmem:[%s283 + $0x38] sm:$0xff]
      %s292 = smul.u32 %s277, 16
      %s293 = scalar_lea.vmem %s251, %s292
      %v294 = vld [vmem:[%s293] sm:$0xff]
      %v295 = vld [vmem:[%s293 + $0x8] sm:$0xff]
      %v296 = vld [vmem:[%s1] sm:$0x1]
      %v298 = vperm.slane %v296, 0
      %v300 = vmul.f32 %v280, %v298
      %v301 = vmul.f32 %v281, %v298
      %v302 = vmul.f32 %v284, %v298
      %v303 = vmul.f32 %v285, %v298
      %v304 = vmul.f32 %v286, %v298
      %v305 = vmul.f32 %v287, %v298
      %v306 = vmul.f32 %v288, %v298
      %v307 = vmul.f32 %v289, %v298
      %v308 = vmul.f32 %v290, %v298
      %v309 = vmul.f32 %v291, %v298
      %v310 = vmul.f32 %v294, %v298
      %v311 = vmul.f32 %v295, %v298
      %v312 = vld [vmem:[%s2] sm:$0x1]
      %v314 = vperm.slane %v312, 0
      %v316 = vadd.f32 %v300, %v314
      %v317 = vadd.f32 %v301, %v314
      %v318 = vadd.f32 %v302, %v314
      %v319 = vadd.f32 %v303, %v314
      %v320 = vadd.f32 %v304, %v314
      %v321 = vadd.f32 %v305, %v314
      %v322 = vadd.f32 %v306, %v314
      %v323 = vadd.f32 %v307, %v314
      %v324 = vadd.f32 %v308, %v314
      %v325 = vadd.f32 %v309, %v314
      %v326 = vadd.f32 %v310, %v314
      %v327 = vadd.f32 %v311, %v314
      %v328 = vmax.f32 %v316, 0.0
      %v329 = vmax.f32 %v317, 0.0
      %v330 = vmax.f32 %v318, 0.0
      %v331 = vmax.f32 %v319, 0.0
      %v332 = vmax.f32 %v320, 0.0
      %v333 = vmax.f32 %v321, 0.0
      %v334 = vmax.f32 %v322, 0.0
      %v335 = vmax.f32 %v323, 0.0
      %v336 = vmax.f32 %v324, 0.0
      %v337 = vmax.f32 %v325, 0.0
      %v338 = vmax.f32 %v326, 0.0
      %v339 = vmax.f32 %v327, 0.0
      %v340 = vstv %s272
      %v341 = vadd.s32 %v340, 1
      %v342 = vadd.s32 %v340, 2
      %v343 = vadd.s32 %v340, 3
      %v344 = vadd.s32 %v340, 4
      %v345 = vadd.s32 %v340, 5
      %vm346 = vcmp.ge.s32.totalorder %v340, 0
      %vm347 = vcmp.ge.s32.totalorder %v341, 0
      %vm348 = vcmp.ge.s32.totalorder %v342, 0
      %vm349 = vcmp.ge.s32.totalorder %v343, 0
      %vm350 = vcmp.ge.s32.totalorder %v344, 0
      %vm351 = vcmp.ge.s32.totalorder %v345, 0
      %vm352 = vcmp.lt.s32.totalorder %v340, 16
      %vm353 = vcmp.lt.s32.totalorder %v341, 16
      %vm354 = vcmp.lt.s32.totalorder %v342, 16
      %vm355 = vcmp.lt.s32.totalorder %v343, 16
      %vm356 = vcmp.lt.s32.totalorder %v344, 16
      %vm357 = vcmp.lt.s32.totalorder %v345, 16
      %vm358 = vmand %vm346, %vm352
      %vm359 = vmand %vm347, %vm353
      %vm360 = vmand %vm348, %vm354
      %vm361 = vmand %vm349, %vm355
      %vm362 = vmand %vm350, %vm356
      %vm363 = vmand %vm351, %vm357
      %v364 = vsel %vm358, %v328, 0.0
      %v365 = vsel %vm358, %v329, 0.0
      %v366 = vsel %vm359, %v330, 0.0
      %v367 = vsel %vm359, %v331, 0.0
      %v368 = vsel %vm360, %v332, 0.0
      %v369 = vsel %vm360, %v333, 0.0
      %v370 = vsel %vm361, %v334, 0.0
      %v371 = vsel %vm361, %v335, 0.0
      %v372 = vsel %vm362, %v336, 0.0
      %v373 = vsel %vm362, %v337, 0.0
      %v374 = vsel %vm363, %v338, 0.0
      %v375 = vsel %vm363, %v339, 0.0
      %vm388 = vcmask 1040384
      %v389 = vrot.slane %v364, 7
      %v390 = vrot.slane %v365, 7
      %v391 = vsel %vm388, %v389, %v390
      %v392 = vrot.slane %v366, 7
      %v393 = vrot.slane %v367, 7
      %v394 = vsel %vm388, %v392, %v393
      %v395 = vrot.slane %v368, 7
      %v396 = vrot.slane %v369, 7
      %v397 = vsel %vm388, %v395, %v396
      %v398 = vrot.slane %v370, 7
      %v399 = vrot.slane %v371, 7
      %v400 = vsel %vm388, %v398, %v399
      %v401 = vrot.slane %v372, 7
      %v402 = vrot.slane %v373, 7
      %v403 = vsel %vm388, %v401, %v402
      %v404 = vrot.slane %v374, 7
      %v405 = vrot.slane %v375, 7
      %v406 = vsel %vm388, %v404, %v405
      %v419 = vsel %vm388, 0.0, %v389
      %v420 = vsel %vm388, 0.0, %v392
      %v421 = vsel %vm388, 0.0, %v395
      %v422 = vsel %vm388, 0.0, %v398
      %v423 = vsel %vm388, 0.0, %v401
      %v424 = vsel %vm388, 0.0, %v404
      %vm425 = vcmask 1046528
      %v426 = vrot.slane %v364, 1
      %v427 = vrot.slane %v365, 1
      %v428 = vsel %vm425, %v426, %v427
      %v429 = vrot.slane %v366, 1
      %v430 = vrot.slane %v367, 1
      %v431 = vsel %vm425, %v429, %v430
      %v432 = vrot.slane %v368, 1
      %v433 = vrot.slane %v369, 1
      %v434 = vsel %vm425, %v432, %v433
      %v435 = vrot.slane %v370, 1
      %v436 = vrot.slane %v371, 1
      %v437 = vsel %vm425, %v435, %v436
      %v438 = vrot.slane %v372, 1
      %v439 = vrot.slane %v373, 1
      %v440 = vsel %vm425, %v438, %v439
      %v441 = vrot.slane %v374, 1
      %v442 = vrot.slane %v375, 1
      %v443 = vsel %vm425, %v441, %v442
      %v450 = vsel %vm425, %v427, 0.0
      %v451 = vsel %vm425, %v430, 0.0
      %v452 = vsel %vm425, %v433, 0.0
      %v453 = vsel %vm425, %v436, 0.0
      %v454 = vsel %vm425, %v439, 0.0
      %v455 = vsel %vm425, %v442, 0.0
      %456 = vrot.lane.b32.xlu0 %v364, 8
      %v457 = vpop.permute.xlu0 %456
      %458 = vrot.lane.b32.xlu0 %v365, 8
      %v459 = vpop.permute.xlu0 %458
      %460 = vrot.lane.b32.xlu0 %v366, 8
      %v461 = vpop.permute.xlu0 %460
      %462 = vrot.lane.b32.xlu0 %v367, 8
      %v463 = vpop.permute.xlu0 %462
      %464 = vrot.lane.b32.xlu0 %v368, 8
      %v465 = vpop.permute.xlu0 %464
      %466 = vrot.lane.b32.xlu0 %v369, 8
      %v467 = vpop.permute.xlu0 %466
      %468 = vrot.lane.b32.xlu0 %v370, 8
      %v469 = vpop.permute.xlu0 %468
      %470 = vrot.lane.b32.xlu0 %v371, 8
      %v471 = vpop.permute.xlu0 %470
      %472 = vrot.lane.b32.xlu0 %v372, 8
      %v473 = vpop.permute.xlu0 %472
      %474 = vrot.lane.b32.xlu0 %v373, 8
      %v475 = vpop.permute.xlu0 %474
      %476 = vrot.lane.b32.xlu0 %v374, 8
      %v477 = vpop.permute.xlu0 %476
      %478 = vrot.lane.b32.xlu0 %v375, 8
      %v479 = vpop.permute.xlu0 %478
      %498 = vrot.lane.b32.xlu0 %v428, 16
      %v499 = vpop.permute.xlu0 %498
      %500 = vrot.lane.b32.xlu0 %v450, 16
      %v501 = vpop.permute.xlu0 %500
      %502 = vrot.lane.b32.xlu0 %v431, 16
      %v503 = vpop.permute.xlu0 %502
      %504 = vrot.lane.b32.xlu0 %v451, 16
      %v505 = vpop.permute.xlu0 %504
      %506 = vrot.lane.b32.xlu0 %v434, 16
      %v507 = vpop.permute.xlu0 %506
      %508 = vrot.lane.b32.xlu0 %v452, 16
      %v509 = vpop.permute.xlu0 %508
      %510 = vrot.lane.b32.xlu0 %v437, 16
      %v511 = vpop.permute.xlu0 %510
      %512 = vrot.lane.b32.xlu0 %v453, 16
      %v513 = vpop.permute.xlu0 %512
      %514 = vrot.lane.b32.xlu0 %v440, 16
      %v515 = vpop.permute.xlu0 %514
      %516 = vrot.lane.b32.xlu0 %v454, 16
      %v517 = vpop.permute.xlu0 %516
      %518 = vrot.lane.b32.xlu0 %v443, 16
      %v519 = vpop.permute.xlu0 %518
      %520 = vrot.lane.b32.xlu0 %v455, 16
      %v521 = vpop.permute.xlu0 %520
      %vm534 = vcmask 64512
      %v535 = vsel %vm534, %v419, %v457
      %v536 = vsel %vm534, %v391, %v459
      %v537 = vsel %vm534, %v420, %v461
      %v538 = vsel %vm534, %v394, %v463
      %v539 = vsel %vm534, %v421, %v465
      %v540 = vsel %vm534, %v397, %v467
      %v541 = vsel %vm534, %v422, %v469
      %v542 = vsel %vm534, %v400, %v471
      %v543 = vsel %vm534, %v423, %v473
      %v544 = vsel %vm534, %v403, %v475
      %v545 = vsel %vm534, %v424, %v477
      %v546 = vsel %vm534, %v406, %v479
      %vm547 = vcmask 130048
      %v548 = vsel %vm547, %v535, %v499
      %v549 = vsel %vm547, %v536, %v501
      %v550 = vsel %vm547, %v537, %v503
      %v551 = vsel %vm547, %v538, %v505
      %v552 = vsel %vm547, %v539, %v507
      %v553 = vsel %vm547, %v540, %v509
      %v554 = vsel %vm547, %v541, %v511
      %v555 = vsel %vm547, %v542, %v513
      %v556 = vsel %vm547, %v543, %v515
      %v557 = vsel %vm547, %v544, %v517
      %v558 = vsel %vm547, %v545, %v519
      %v559 = vsel %vm547, %v546, %v521
      %vm560 = vcmask 195584
      %561 = vst.msk [vmem:[#allocation2] sm:$0xff] %vm560, %v548
      %562 = vst.msk [vmem:[#allocation2 + $0x8] sm:$0xff] %vm560, %v549
      %563 = vst.msk [vmem:[#allocation2 + $0x10] sm:$0xff] %vm560, %v550
      %564 = vst.msk [vmem:[#allocation2 + $0x18] sm:$0xff] %vm560, %v551
      %565 = vst.msk [vmem:[#allocation2 + $0x20] sm:$0xff] %vm560, %v552
      %566 = vst.msk [vmem:[#allocation2 + $0x28] sm:$0xff] %vm560, %v553
      %567 = vst.msk [vmem:[#allocation2 + $0x30] sm:$0xff] %vm560, %v554
      %568 = vst.msk [vmem:[#allocation2 + $0x38] sm:$0xff] %vm560, %v555
      %569 = vst.msk [vmem:[#allocation2 + $0x40] sm:$0xff] %vm560, %v556
      %570 = vst.msk [vmem:[#allocation2 + $0x48] sm:$0xff] %vm560, %v557
      %571 = vst.msk [vmem:[#allocation2 + $0x50] sm:$0xff] %vm560, %v558
      %572 = vst.msk [vmem:[#allocation2 + $0x58] sm:$0xff] %vm560, %v559
      %v573 = vld [vmem:[#allocation2] sm:$0xff]
      %v574 = vld [vmem:[#allocation2 + $0x8] sm:$0xff]
      %v575 = vld [vmem:[#allocation2 + $0x10] sm:$0xff]
      %v576 = vld [vmem:[#allocation2 + $0x18] sm:$0xff]
      %v577 = vld [vmem:[#allocation2 + $0x20] sm:$0xff]
      %v578 = vld [vmem:[#allocation2 + $0x28] sm:$0xff]
      %v579 = vld [vmem:[#allocation2 + $0x30] sm:$0xff]
      %v580 = vld [vmem:[#allocation2 + $0x38] sm:$0xff]
      %v581 = vld [vmem:[%s3] sm:$0xff]
      %v582 = vld [vmem:[%s3 + $0x8] sm:$0xff]
      %v583 = vld [vmem:[%s3 + $0x10] sm:$0xff]
      %s584 = scalar_lea.vmem [#allocation2], 16
      %v585 = vld [vmem:[%s584] sm:$0xff]
      %v586 = vld [vmem:[%s584 + $0x8] sm:$0xff]
      %v587 = vld [vmem:[%s584 + $0x10] sm:$0xff]
      %v588 = vld [vmem:[%s584 + $0x18] sm:$0xff]
      %v589 = vld [vmem:[%s584 + $0x20] sm:$0xff]
      %v590 = vld [vmem:[%s584 + $0x28] sm:$0xff]
      %v591 = vld [vmem:[%s584 + $0x30] sm:$0xff]
      %v592 = vld [vmem:[%s584 + $0x38] sm:$0xff]
      %s593 = scalar_lea.vmem %s3, 24
      %v594 = vld [vmem:[%s593] sm:$0xff]
      %v595 = vld [vmem:[%s593 + $0x8] sm:$0xff]
      %v596 = vld [vmem:[%s593 + $0x10] sm:$0xff]
      %v598 = vsel %vm560, %v585, 0
      %v601 = vsel %vm560, %v586, 0
      %v604 = vsel %vm560, %v587, 0
      %v607 = vsel %vm560, %v588, 0
      %v610 = vsel %vm560, %v589, 0
      %v613 = vsel %vm560, %v590, 0
      %v616 = vsel %vm560, %v591, 0
      %v619 = vsel %vm560, %v592, 0
      %621 = vmatpush.msra.mxu0 0.0
      %622 = vmatpush.msra.mxu0 0.0
      %623 = vmatpush.msra.mxu0 0.0
      %624 = vmatpush.msra.mxu0 0.0
      %625 = vmatpush.msra.mxu0 0.0
      %626 = vmatpush.msra.mxu0 0.0
      %627 = vmatpush.msra.mxu0 0.0
      %628 = vmatpush.msra.mxu0 0.0
      %629 = vmatpush.msra.mxu0 0.0
      %630 = vmatpush.msra.mxu0 0.0
      %631 = vmatpush.msra.mxu0 0.0
      %632 = vmatpush.msra.mxu0 0.0
      %633 = vmatpush.msra.mxu0 0.0
      %634 = vmatpush.msra.mxu0 %v596
      %635 = vmatpush.msra.mxu0 %v595
      %636 = vmatpush.msra.mxu0 %v594
      %637 = vmatmul.f32.gmra.mxu0 %v598
      %v638 = vpop.f32.mrf.mxu0
      %v639 = vadd.f32 0.0, %v638
      %640 = vmatmul.f32.gmra.mxu0 %v601
      %v641 = vpop.f32.mrf.mxu0
      %v642 = vadd.f32 0.0, %v641
      %643 = vmatmul.f32.gmra.mxu0 %v604
      %v644 = vpop.f32.mrf.mxu0
      %v645 = vadd.f32 0.0, %v644
      %646 = vmatmul.f32.gmra.mxu0 %v607
      %v647 = vpop.f32.mrf.mxu0
      %v648 = vadd.f32 0.0, %v647
      %649 = vmatmul.f32.gmra.mxu0 %v610
      %v650 = vpop.f32.mrf.mxu0
      %v651 = vadd.f32 0.0, %v650
      %652 = vmatmul.f32.gmra.mxu0 %v613
      %v653 = vpop.f32.mrf.mxu0
      %v654 = vadd.f32 0.0, %v653
      %655 = vmatmul.f32.gmra.mxu0 %v616
      %v656 = vpop.f32.mrf.mxu0
      %v657 = vadd.f32 0.0, %v656
      %658 = vmatmul.f32.gmra.mxu0 %v619
      %v659 = vpop.f32.mrf.mxu0
      %v660 = vadd.f32 0.0, %v659
      %661 = vdwg.mxu0
      %v663 = vsel %vm560, %v573, 0
      %v666 = vsel %vm560, %v574, 0
      %v669 = vsel %vm560, %v575, 0
      %v672 = vsel %vm560, %v576, 0
      %v675 = vsel %vm560, %v577, 0
      %v678 = vsel %vm560, %v578, 0
      %v681 = vsel %vm560, %v579, 0
      %v684 = vsel %vm560, %v580, 0
      %686 = vmatpush.msra.mxu0 0.0
      %687 = vmatpush.msra.mxu0 0.0
      %688 = vmatpush.msra.mxu0 0.0
      %689 = vmatpush.msra.mxu0 0.0
      %690 = vmatpush.msra.mxu0 0.0
      %691 = vmatpush.msra.mxu0 0.0
      %692 = vmatpush.msra.mxu0 0.0
      %693 = vmatpush.msra.mxu0 0.0
      %694 = vmatpush.msra.mxu0 0.0
      %695 = vmatpush.msra.mxu0 0.0
      %696 = vmatpush.msra.mxu0 0.0
      %697 = vmatpush.msra.mxu0 0.0
      %698 = vmatpush.msra.mxu0 0.0
      %699 = vmatpush.msra.mxu0 %v583
      %700 = vmatpush.msra.mxu0 %v582
      %701 = vmatpush.msra.mxu0 %v581
      %702 = vmatmul.f32.gmra.mxu0 %v663
      %v703 = vpop.f32.mrf.mxu0
      %v704 = vadd.f32 %v639, %v703
      %705 = vmatmul.f32.gmra.mxu0 %v666
      %v706 = vpop.f32.mrf.mxu0
      %v707 = vadd.f32 %v642, %v706
      %708 = vmatmul.f32.gmra.mxu0 %v669
      %v709 = vpop.f32.mrf.mxu0
      %v710 = vadd.f32 %v645, %v709
      %711 = vmatmul.f32.gmra.mxu0 %v672
      %v712 = vpop.f32.mrf.mxu0
      %v713 = vadd.f32 %v648, %v712
      %714 = vmatmul.f32.gmra.mxu0 %v675
      %v715 = vpop.f32.mrf.mxu0
      %v716 = vadd.f32 %v651, %v715
      %717 = vmatmul.f32.gmra.mxu0 %v678
      %v718 = vpop.f32.mrf.mxu0
      %v719 = vadd.f32 %v654, %v718
      %720 = vmatmul.f32.gmra.mxu0 %v681
      %v721 = vpop.f32.mrf.mxu0
      %v722 = vadd.f32 %v657, %v721
      %723 = vmatmul.f32.gmra.mxu0 %v684
      %v724 = vpop.f32.mrf.mxu0
      %v725 = vadd.f32 %v660, %v724
      %726 = vdwg.mxu0
      %s727 = scalar_lea.vmem [#allocation2], 32
      %v728 = vld [vmem:[%s727] sm:$0xff]
      %v729 = vld [vmem:[%s727 + $0x8] sm:$0xff]
      %v730 = vld [vmem:[%s727 + $0x10] sm:$0xff]
      %v731 = vld [vmem:[%s727 + $0x18] sm:$0xff]
      %v732 = vld [vmem:[%s727 + $0x20] sm:$0xff]
      %v733 = vld [vmem:[%s727 + $0x28] sm:$0xff]
      %v734 = vld [vmem:[%s727 + $0x30] sm:$0xff]
      %v735 = vld [vmem:[%s727 + $0x38] sm:$0xff]
      %s736 = scalar_lea.vmem %s3, 48
      %v737 = vld [vmem:[%s736] sm:$0xff]
      %v738 = vld [vmem:[%s736 + $0x8] sm:$0xff]
      %v739 = vld [vmem:[%s736 + $0x10] sm:$0xff]
      %v741 = vsel %vm560, %v728, 0
      %v744 = vsel %vm560, %v729, 0
      %v747 = vsel %vm560, %v730, 0
      %v750 = vsel %vm560, %v731, 0
      %v753 = vsel %vm560, %v732, 0
      %v756 = vsel %vm560, %v733, 0
      %v759 = vsel %vm560, %v734, 0
      %v762 = vsel %vm560, %v735, 0
      %764 = vmatpush.msra.mxu0 0.0
      %765 = vmatpush.msra.mxu0 0.0
      %766 = vmatpush.msra.mxu0 0.0
      %767 = vmatpush.msra.mxu0 0.0
      %768 = vmatpush.msra.mxu0 0.0
      %769 = vmatpush.msra.mxu0 0.0
      %770 = vmatpush.msra.mxu0 0.0
      %771 = vmatpush.msra.mxu0 0.0
      %772 = vmatpush.msra.mxu0 0.0
      %773 = vmatpush.msra.mxu0 0.0
      %774 = vmatpush.msra.mxu0 0.0
      %775 = vmatpush.msra.mxu0 0.0
      %776 = vmatpush.msra.mxu0 0.0
      %777 = vmatpush.msra.mxu0 %v739
      %778 = vmatpush.msra.mxu0 %v738
      %779 = vmatpush.msra.mxu0 %v737
      %780 = vmatmul.f32.gmra.mxu0 %v741
      %v781 = vpop.f32.mrf.mxu0
      %v782 = vadd.f32 0.0, %v781
      %783 = vmatmul.f32.gmra.mxu0 %v744
      %v784 = vpop.f32.mrf.mxu0
      %v785 = vadd.f32 0.0, %v784
      %786 = vmatmul.f32.gmra.mxu0 %v747
      %v787 = vpop.f32.mrf.mxu0
      %v788 = vadd.f32 0.0, %v787
      %789 = vmatmul.f32.gmra.mxu0 %v750
      %v790 = vpop.f32.mrf.mxu0
      %v791 = vadd.f32 0.0, %v790
      %792 = vmatmul.f32.gmra.mxu0 %v753
      %v793 = vpop.f32.mrf.mxu0
      %v794 = vadd.f32 0.0, %v793
      %795 = vmatmul.f32.gmra.mxu0 %v756
      %v796 = vpop.f32.mrf.mxu0
      %v797 = vadd.f32 0.0, %v796
      %798 = vmatmul.f32.gmra.mxu0 %v759
      %v799 = vpop.f32.mrf.mxu0
      %v800 = vadd.f32 0.0, %v799
      %801 = vmatmul.f32.gmra.mxu0 %v762
      %v802 = vpop.f32.mrf.mxu0
      %v803 = vadd.f32 0.0, %v802
      %804 = vdwg.mxu0
      %v805 = vadd.f32 %v704, %v782
      %v806 = vadd.f32 %v707, %v785
      %v807 = vadd.f32 %v710, %v788
      %v808 = vadd.f32 %v713, %v791
      %v809 = vadd.f32 %v716, %v794
      %v810 = vadd.f32 %v719, %v797
      %v811 = vadd.f32 %v722, %v800
      %v812 = vadd.f32 %v725, %v803
      %813 = vst.msk [vmem:[%s261] sm:$0xff] %vm534, %v805
      %814 = vst.msk [vmem:[%s261 + $0x8] sm:$0xff] %vm534, %v806
      %815 = vst.msk [vmem:[%s261 + $0x10] sm:$0xff] %vm534, %v807
      %816 = vst.msk [vmem:[%s261 + $0x18] sm:$0xff] %vm534, %v808
      %817 = vst.msk [vmem:[%s261 + $0x20] sm:$0xff] %vm534, %v809
      %818 = vst.msk [vmem:[%s261 + $0x28] sm:$0xff] %vm534, %v810
      %819 = vst.msk [vmem:[%s261 + $0x30] sm:$0xff] %vm534, %v811
      %820 = vst.msk [vmem:[%s261 + $0x38] sm:$0xff] %vm534, %v812
      %v821 = vsel %vm534, %v805, 0.0
      %v822 = vsel %vm534, %v806, 0.0
      %v823 = vadd.f32 %v821, %v822
      %v824 = vsel %vm534, %v807, 0.0
      %v825 = vadd.f32 %v823, %v824
      %v826 = vsel %vm534, %v808, 0.0
      %v827 = vadd.f32 %v825, %v826
      %v828 = vsel %vm534, %v809, 0.0
      %v829 = vadd.f32 %v827, %v828
      %v830 = vsel %vm534, %v810, 0.0
      %v831 = vadd.f32 %v829, %v830
      %v832 = vsel %vm534, %v811, 0.0
      %v833 = vadd.f32 %v831, %v832
      %v834 = vsel %vm534, %v812, 0.0
      %v835 = vadd.f32 %v833, %v834
      %v836 = vrot.slane %v835, 4
      %v837 = vadd.f32 %v835, %v836
      %v838 = vrot.slane %v837, 2
      %v839 = vadd.f32 %v837, %v838
      %v840 = vrot.slane %v839, 1
      %v841 = vadd.f32 %v839, %v840
      %v842 = vmul.f32 %v805, %v805
      %v843 = vmul.f32 %v806, %v806
      %v844 = vmul.f32 %v807, %v807
      %v845 = vmul.f32 %v808, %v808
      %v846 = vmul.f32 %v809, %v809
      %v847 = vmul.f32 %v810, %v810
      %v848 = vmul.f32 %v811, %v811
      %v849 = vmul.f32 %v812, %v812
      %v850 = vsel %vm534, %v842, 0.0
      %v851 = vsel %vm534, %v843, 0.0
      %v852 = vadd.f32 %v850, %v851
      %v853 = vsel %vm534, %v844, 0.0
      %v854 = vadd.f32 %v852, %v853
      %v855 = vsel %vm534, %v845, 0.0
      %v856 = vadd.f32 %v854, %v855
      %v857 = vsel %vm534, %v846, 0.0
      %v858 = vadd.f32 %v856, %v857
      %v859 = vsel %vm534, %v847, 0.0
      %v860 = vadd.f32 %v858, %v859
      %v861 = vsel %vm534, %v848, 0.0
      %v862 = vadd.f32 %v860, %v861
      %v863 = vsel %vm534, %v849, 0.0
      %v864 = vadd.f32 %v862, %v863
      %v865 = vrot.slane %v864, 4
      %v866 = vadd.f32 %v864, %v865
      %v867 = vrot.slane %v866, 2
      %v868 = vadd.f32 %v866, %v867
      %v869 = vrot.slane %v868, 1
      %v870 = vadd.f32 %v868, %v869
      %v871 = vsel %vm388, %v841, %v870
      %vm872 = vcmask 58368
      %873 = vst.msk [vmem:[%s270] sm:$0x3] %vm872, %v871
      %s874 = smul.u32 4, %s22
      %p875 = scmp.lt.s32.totalorder %s21, 1
      %s876 = scalar_select %p875, %s21, 1
      %p877 = scmp.lt.s32.totalorder %s874, 15
      %s878 = scalar_select %p877, %s874, 15
      %s879 = smul.addr %s878, 2
      %s880 = smul.addr %s876, 32
      %s881 = sadd.s32 %s879, %s880
      %s882 = smul.addr %s881, 8
      %s883 = scalar_lea.vmem %s4, %s882
      %p884 = scmp.lt.s32.totalorder %s21, 1
      %s885 = scalar_select %p884, %s21, 1
      %p886 = scmp.lt.s32.totalorder %s22, 3
      %s887 = scalar_select %p886, %s22, 3
      %s888 = smul.addr %s885, 4
      %s889 = sadd.s32 %s887, %s888
      %s890 = smul.addr %s889, 2
      %s891 = scalar_lea.vmem %s5, %s890
      // Predicated region
      $region37: #{bottleneck_forward.5} parent=35 // pred_check
        %p892 = pneg %p138
      $region38: #{bottleneck_forward.5} parent=35 // pred_check_branch
        %894 = sbr.rel (%p892) target = $region40
      $region39: #{bottleneck_forward.5} parent=35 // pred_region
        %s895 = smul.u32 4, %s22
      $region40: #{bottleneck_forward.5} parent=35 // pred_fallthru
        _
      // Predicated region
      $region41: #{bottleneck_forward.5} parent=35 // pred_check
        %p896 = pneg %p166
      $region42: #{bottleneck_forward.5} parent=35 // pred_check_branch
        %898 = sbr.rel (%p896) target = $region44
      $region43: #{bottleneck_forward.5} parent=35 // pred_region
        _
      $region44: #{bottleneck_forward.5} parent=35 // pred_fallthru
        _
    $region36: #{bottleneck_forward.5} parent=5 // pred_fallthru
      _
    %p899 = scmp.le.s32.totalorder 2, %s12
    // Predicated region
    $region45: #{bottleneck_forward.5} parent=5 // pred_check
      %p900 = pneg %p899
    $region46: #{bottleneck_forward.5} parent=5 // pred_check_branch
      %902 = sbr.rel (%p900) target = $region48
    $region47: #{bottleneck_forward.5} parent=5 // pred_region
      %s903 = ssub.s32 %s12, 2
      // Predicated region
      $region49: #{bottleneck_forward.5} parent=47 // pred_check
        %p904 = pneg %p144
      $region50: #{bottleneck_forward.5} parent=47 // pred_check_branch
        %906 = sbr.rel (%p904) target = $region52
      $region51: #{bottleneck_forward.5} parent=47 // pred_region
        %s907 = smul.u32 4, %s24
        %p908 = scmp.lt.s32.totalorder %s23, 1
        %s909 = scalar_select %p908, %s23, 1
        %p910 = scmp.lt.s32.totalorder %s907, 15
        %s911 = scalar_select %p910, %s907, 15
        %s912 = smul.addr %s911, 2
        %s913 = smul.addr %s909, 32
        %s914 = sadd.s32 %s912, %s913
        %s915 = smul.addr %s914, 8
        %s916 = scalar_lea.vmem %s4, %s915
      $region52: #{bottleneck_forward.5} parent=47 // pred_fallthru
        _
      // Predicated region
      $region53: #{bottleneck_forward.5} parent=47 // pred_check
        %p917 = pneg %p172
      $region54: #{bottleneck_forward.5} parent=47 // pred_check_branch
        %919 = sbr.rel (%p917) target = $region56
      $region55: #{bottleneck_forward.5} parent=47 // pred_region
        %p920 = scmp.lt.s32.totalorder %s23, 1
        %s921 = scalar_select %p920, %s23, 1
        %p922 = scmp.lt.s32.totalorder %s24, 3
        %s923 = scalar_select %p922, %s24, 3
        %s924 = smul.addr %s921, 4
        %s925 = sadd.s32 %s923, %s924
        %s926 = smul.addr %s925, 2
        %s927 = scalar_lea.vmem %s5, %s926
      $region56: #{bottleneck_forward.5} parent=47 // pred_fallthru
        _
    $region48: #{bottleneck_forward.5} parent=5 // pred_fallthru
      _
  $region6: #{bottleneck_forward.5} parent=0 // loop_footer
    %s16 = sadd.s32 1, %s12
  $region7: #{bottleneck_forward.5} parent=0 // loop_footer_branch
    %11 = sbr.rel target = $region3
  $region8: #{bottleneck_forward.5} parent=0 // loop_exit
    _

// kernel: bottleneck_forward.7
$region0: #{bottleneck_forward.7}
  #allocation0 [shape = 'u32[]', space=smem, size = 0x4, offset = 0x4, fixed_abs, tag = 'smem constant byte address 0x4 - core index']
  #allocation1 [shape = 'u32[72,128]{1,0:T(1,128)}', space=vmem, size = 0x9000, scoped, tag = 'internal scratch']
  %s0 = inlined_call_operand.vmem [shape: f32[512,8], index: 0, kind: input, shape index: {}]
  %s1 = inlined_call_operand.vmem [shape: f32[512,4], index: 1, kind: input, shape index: {}]
  %s2 = inlined_call_operand.vmem [shape: f32[1,8], index: 2, kind: input, shape index: {}]
  %s3 = inlined_call_operand.vmem [shape: f32[1,8], index: 3, kind: input, shape index: {}]
  %s4 = inlined_call_operand.vmem [shape: f32[512,8], index: 4, kind: output, shape index: {}]
  %s5 = sld [smem:[#allocation0]]
  $region49: #{bottleneck_forward.7} parent=0
    _
  %s7 = ssub.s32 1, %s5
  %s8 = scalar_select 0, %s7, %s5
  loop: start=0, step=1, limit=6
  $region2: #{bottleneck_forward.7} parent=0 // loop_pre_header
    _
  $region3: #{bottleneck_forward.7} parent=0 // loop_header
    %s10 = sphi 0, %s14
    %p11 = scmp.ge.s32.totalorder %s10, 6
    %s20 = sphi 0, %s22
    %s23 = sphi 0, %s20
    %s24 = sphi 0, %s23
    %s40 = sphi 0, %s24
    %s46 = sphi 0, %s48
    %s49 = sphi 0, %s46
    %s50 = sphi 0, %s49
    %s66 = sphi 0, %s50
    %s70 = sphi 0, %s70
    %s72 = sphi 0, %s70
    %s73 = sphi 0, %s72
    %s87 = sphi 0, %s73
    %s91 = sphi 0, %s91
    %s93 = sphi 0, %s91
    %s94 = sphi 0, %s93
    %s108 = sphi 0, %s94
    %s114 = sphi 0, %s116
    %s117 = sphi 0, %s114
    %s118 = sphi 0, %s117
    %s134 = sphi 0, %s118
  $region4: #{bottleneck_forward.7} parent=0 // loop_header_branch
    %13 = sbr.rel (%p11) target = $region8
  $region5: #{bottleneck_forward.7} parent=0 // loop_body
    %s15 = ssub.s32 %s10, 1
    %s16 = ssub.s32 %s10, 2
    %s17 = sadd.s32 %s10, 1
    %s18 = ssub.s32 %s10, %s17
    %p19 = scmp.eq.s32.totalorder %s18, 0
    %s21 = sadd.s32 %s20, 1
    %s22 = scalar_select %p19, %s20, %s21
    %p25 = pneg %p19
    %p26 = scmp.eq.s32.totalorder %s10, 3
    %p27 = por %p25, %p26
    %p28 = scmp.ne.s32.totalorder %s20, %s23
    %p29 = scmp.eq.s32.totalorder %s10, 0
    %p30 = por %p28, %p29
    %p31 = scmp.ne.s32.totalorder %s20, %s23
    %p32 = scmp.eq.s32.totalorder %s15, 3
    %p33 = por %p31, %p32
    %p34 = scmp.ne.s32.totalorder %s23, %s24
    %p35 = scmp.eq.s32.totalorder %s15, 0
    %p36 = por %p34, %p35
    %p37 = scmp.ne.s32.totalorder %s23, %s24
    %p38 = scmp.eq.s32.totalorder %s16, 3
    %p39 = por %p37, %p38
    %p41 = scmp.ne.s32.totalorder %s24, %s40
    %p42 = scmp.eq.s32.totalorder %s16, 0
    %p43 = por %p41, %p42
    %s44 = ssub.s32 %s10, %s17
    %p45 = scmp.eq.s32.totalorder %s44, 0
    %s47 = sadd.s32 %s46, 1
    %s48 = scalar_select %p45, %s46, %s47
    %p51 = pneg %p45
    %p52 = scmp.eq.s32.totalorder %s10, 3
    %p53 = por %p51, %p52
    %p54 = scmp.ne.s32.totalorder %s46, %s49
    %p55 = scmp.eq.s32.totalorder %s10, 0
    %p56 = por %p54, %p55
    %p57 = scmp.ne.s32.totalorder %s46, %s49
    %p58 = scmp.eq.s32.totalorder %s15, 3
    %p59 = por %p57, %p58
    %p60 = scmp.ne.s32.totalorder %s49, %s50
    %p61 = scmp.eq.s32.totalorder %s15, 0
    %p62 = por %p60, %p61
    %p63 = scmp.ne.s32.totalorder %s49, %s50
    %p64 = scmp.eq.s32.totalorder %s16, 3
    %p65 = por %p63, %p64
    %p67 = scmp.ne.s32.totalorder %s50, %s66
    %p68 = scmp.eq.s32.totalorder %s16, 0
    %p69 = por %p67, %p68
    %s71 = sadd.s32 %s70, 1
    %p74 = scmp.eq.s32.totalorder %s10, 3
    %p75 = scmp.ne.s32.totalorder %s70, %s72
    %p76 = scmp.eq.s32.totalorder %s10, 0
    %p77 = por %p75, %p76
    %p78 = scmp.ne.s32.totalorder %s70, %s72
    %p79 = scmp.eq.s32.totalorder %s15, 3
    %p80 = por %p78, %p79
    %p81 = scmp.ne.s32.totalorder %s72, %s73
    %p82 = scmp.eq.s32.totalorder %s15, 0
    %p83 = por %p81, %p82
    %p84 = scmp.ne.s32.totalorder %s72, %s73
    %p85 = scmp.eq.s32.totalorder %s16, 3
    %p86 = por %p84, %p85
    %p88 = scmp.ne.s32.totalorder %s73, %s87
    %p89 = scmp.eq.s32.totalorder %s16, 0
    %p90 = por %p88, %p89
    %s92 = sadd.s32 %s91, 1
    %p95 = scmp.eq.s32.totalorder %s10, 3
    %p96 = scmp.ne.s32.totalorder %s91, %s93
    %p97 = scmp.eq.s32.totalorder %s10, 0
    %p98 = por %p96, %p97
    %p99 = scmp.ne.s32.totalorder %s91, %s93
    %p100 = scmp.eq.s32.totalorder %s15, 3
    %p101 = por %p99, %p100
    %p102 = scmp.ne.s32.totalorder %s93, %s94
    %p103 = scmp.eq.s32.totalorder %s15, 0
    %p104 = por %p102, %p103
    %p105 = scmp.ne.s32.totalorder %s93, %s94
    %p106 = scmp.eq.s32.totalorder %s16, 3
    %p107 = por %p105, %p106
    %p109 = scmp.ne.s32.totalorder %s94, %s108
    %p110 = scmp.eq.s32.totalorder %s16, 0
    %p111 = por %p109, %p110
    %s112 = ssub.s32 %s10, %s17
    %p113 = scmp.eq.s32.totalorder %s112, 0
    %s115 = sadd.s32 %s114, 1
    %s116 = scalar_select %p113, %s114, %s115
    %p119 = pneg %p113
    %p120 = scmp.eq.s32.totalorder %s10, 3
    %p121 = por %p119, %p120
    %p122 = scmp.ne.s32.totalorder %s114, %s117
    %p123 = scmp.eq.s32.totalorder %s10, 0
    %p124 = por %p122, %p123
    %p125 = scmp.ne.s32.totalorder %s114, %s117
    %p126 = scmp.eq.s32.totalorder %s15, 3
    %p127 = por %p125, %p126
    %p128 = scmp.ne.s32.totalorder %s117, %s118
    %p129 = scmp.eq.s32.totalorder %s15, 0
    %p130 = por %p128, %p129
    %p131 = scmp.ne.s32.totalorder %s117, %s118
    %p132 = scmp.eq.s32.totalorder %s16, 3
    %p133 = por %p131, %p132
    %p135 = scmp.ne.s32.totalorder %s118, %s134
    %p136 = scmp.eq.s32.totalorder %s16, 0
    %p137 = por %p135, %p136
    %p138 = scmp.le.s32.totalorder 1, %s10
    %p139 = scmp.lt.s32.totalorder %s10, 5
    %p140 = pnand %p138, %p139
    %p141 = pneg %p140
    // Predicated region
    $region9: #{bottleneck_forward.7} parent=5 // pred_check
      _
    $region10: #{bottleneck_forward.7} parent=5 // pred_check_branch
      %143 = sbr.rel (%p140) target = $region12
    $region11: #{bottleneck_forward.7} parent=5 // pred_region
      %s144 = ssub.s32 %s10, 1
      // Predicated region
      $region13: #{bottleneck_forward.7} parent=11 // pred_check
        %p145 = pneg %p83
      $region14: #{bottleneck_forward.7} parent=11 // pred_check_branch
        %147 = sbr.rel (%p145) target = $region16
      $region15: #{bottleneck_forward.7} parent=11 // pred_region
        _
      $region16: #{bottleneck_forward.7} parent=11 // pred_fallthru
        _
      // Predicated region
      $region17: #{bottleneck_forward.7} parent=11 // pred_check
        %p148 = pneg %p104
      $region18: #{bottleneck_forward.7} parent=11 // pred_check_branch
        %150 = sbr.rel (%p148) target = $region20
      $region19: #{bottleneck_forward.7} parent=11 // pred_region
        _
      $region20: #{bottleneck_forward.7} parent=11 // pred_fallthru
        _
    $region12: #{bottleneck_forward.7} parent=5 // pred_fallthru
      _
    %p151 = scmp.lt.s32.totalorder %s10, 4
    // Predicated region
    $region21: #{bottleneck_forward.7} parent=5 // pred_check
      %p152 = pneg %p151
    $region22: #{bottleneck_forward.7} parent=5 // pred_check_branch
      %154 = sbr.rel (%p152) target = $region24
    $region23: #{bottleneck_forward.7} parent=5 // pred_region
      // Predicated region
      $region25: #{bottleneck_forward.7} parent=23 // pred_check
        %p155 = pneg %p30
      $region26: #{bottleneck_forward.7} parent=23 // pred_check_branch
        %157 = sbr.rel (%p155) target = $region28
      $region27: #{bottleneck_forward.7} parent=23 // pred_region
        %s158 = smul.u32 16, %s10
        %p159 = scmp.lt.s32.totalorder %s158, 63
        %s160 = scalar_select %p159, %s158, 63
        %s161 = smul.addr %s160, 8
        %s162 = scalar_lea.vmem %s0, %s161
        %s163 = smul.u32 16, %s10
      $region28: #{bottleneck_forward.7} parent=23 // pred_fallthru
        _
      // Predicated region
      $region29: #{bottleneck_forward.7} parent=23 // pred_check
        %p164 = pneg %p56
      $region30: #{bottleneck_forward.7} parent=23 // pred_check_branch
        %166 = sbr.rel (%p164) target = $region32
      $region31: #{bottleneck_forward.7} parent=23 // pred_region
        %s167 = smul.u32 16, %s10
        %p168 = scmp.lt.s32.totalorder %s167, 63
        %s169 = scalar_select %p168, %s167, 63
        %s170 = smul.addr %s169, 8
        %s171 = scalar_lea.vmem %s1, %s170
        %s172 = smul.u32 16, %s10
      $region32: #{bottleneck_forward.7} parent=23 // pred_fallthru
        _
    $region24: #{bottleneck_forward.7} parent=5 // pred_fallthru
      _
    %p173 = scmp.le.s32.totalorder 1, %s10
    %p174 = scmp.lt.s32.totalorder %s10, 5
    %p175 = pnand %p173, %p174
    %p176 = pneg %p175
    // Predicated region
    $region33: #{bottleneck_forward.7} parent=5 // pred_check
      _
    $region34: #{bottleneck_forward.7} parent=5 // pred_check_branch
      %178 = sbr.rel (%p175) target = $region36
    $region35: #{bottleneck_forward.7} parent=5 // pred_region
      %s179 = ssub.s32 %s10, 1
      %s180 = smul.u32 16, %s15
      %p181 = scmp.lt.s32.totalorder %s180, 63
      %s182 = scalar_select %p181, %s180, 63
      %s183 = smul.addr %s182, 8
      %s184 = scalar_lea.vmem %s0, %s183
      %p185 = pneg %p36
      %p186 = pneg %p33
      %s187 = smul.u32 16, %s15
      %p188 = scmp.lt.s32.totalorder %s187, 63
      %s189 = scalar_select %p188, %s187, 63
      %s190 = smul.addr %s189, 8
      %s191 = scalar_lea.vmem %s1, %s190
      %p192 = pneg %p62
      %p193 = pneg %p59
      %p194 = pneg %p83
      %p195 = pneg %p80
      %p196 = pneg %p104
      %p197 = pneg %p101
      %p198 = pneg %p130
      %p199 = pneg %p127
      %s200 = smul.u32 16, %s15
      %p201 = scmp.lt.s32.totalorder %s200, 63
      %s202 = scalar_select %p201, %s200, 63
      %s203 = smul.addr %s202, 8
      %s204 = scalar_lea.vmem %s4, %s203
      %s205 = smul.u32 16, %s15
      %p206 = scmp.lt.s32.totalorder %s205, 63
      %s207 = scalar_select %p206, %s205, 63
      %s208 = smul.addr %s207, 8
      %s209 = scalar_lea.vmem %s0, %s208
      %s210 = smul.u32 16, %s15
      %s211 = smul.u32 16, %s15
      %p212 = scmp.lt.s32.totalorder %s211, 63
      %s213 = scalar_select %p212, %s211, 63
      %s214 = smul.addr %s213, 8
      %s215 = scalar_lea.vmem %s1, %s214
      %s216 = smul.u32 16, %s15
      %s217 = smul.u32 16, %s15
      %p218 = scmp.lt.s32.totalorder %s217, 63
      %s219 = scalar_select %p218, %s217, 63
      %s220 = smul.addr %s219, 8
      %s221 = scalar_lea.vmem %s4, %s220
      %s222 = smul.u32 16, %s15
      %v223 = vld [vmem:[%s209] sm:$0xff]
      %v224 = vld [vmem:[%s209 + $0x8] sm:$0xff]
      %v225 = vld [vmem:[%s209 + $0x10] sm:$0xff]
      %v226 = vld [vmem:[%s209 + $0x18] sm:$0xff]
      %v227 = vld [vmem:[%s209 + $0x20] sm:$0xff]
      %v228 = vld [vmem:[%s209 + $0x28] sm:$0xff]
      %v229 = vld [vmem:[%s209 + $0x30] sm:$0xff]
      %v230 = vld [vmem:[%s209 + $0x38] sm:$0xff]
      %v231 = vld [vmem:[%s209 + $0x40] sm:$0xff]
      %v232 = vld [vmem:[%s209 + $0x48] sm:$0xff]
      %v233 = vld [vmem:[%s209 + $0x50] sm:$0xff]
      %v234 = vld [vmem:[%s209 + $0x58] sm:$0xff]
      %v235 = vld [vmem:[%s209 + $0x60] sm:$0xff]
      %v236 = vld [vmem:[%s209 + $0x68] sm:$0xff]
      %v237 = vld [vmem:[%s209 + $0x70] sm:$0xff]
      %v238 = vld [vmem:[%s209 + $0x78] sm:$0xff]
      %v239 = vld [vmem:[%s2] sm:$0x1]
      %v241 = vperm.slane %v239, 0
      %v243 = vmul.f32 %v223, %v241
      %v244 = vmul.f32 %v224, %v241
      %v245 = vmul.f32 %v225, %v241
      %v246 = vmul.f32 %v226, %v241
      %v247 = vmul.f32 %v227, %v241
      %v248 = vmul.f32 %v228, %v241
      %v249 = vmul.f32 %v229, %v241
      %v250 = vmul.f32 %v230, %v241
      %v251 = vmul.f32 %v231, %v241
      %v252 = vmul.f32 %v232, %v241
      %v253 = vmul.f32 %v233, %v241
      %v254 = vmul.f32 %v234, %v241
      %v255 = vmul.f32 %v235, %v241
      %v256 = vmul.f32 %v236, %v241
      %v257 = vmul.f32 %v237, %v241
      %v258 = vmul.f32 %v238, %v241
      %v259 = vld [vmem:[%s3] sm:$0x1]
      %v261 = vperm.slane %v259, 0
      %v263 = vadd.f32 %v243, %v261
      %v264 = vadd.f32 %v244, %v261
      %v265 = vadd.f32 %v245, %v261
      %v266 = vadd.f32 %v246, %v261
      %v267 = vadd.f32 %v247, %v261
      %v268 = vadd.f32 %v248, %v261
      %v269 = vadd.f32 %v249, %v261
      %v270 = vadd.f32 %v250, %v261
      %v271 = vadd.f32 %v251, %v261
      %v272 = vadd.f32 %v252, %v261
      %v273 = vadd.f32 %v253, %v261
      %v274 = vadd.f32 %v254, %v261
      %v275 = vadd.f32 %v255, %v261
      %v276 = vadd.f32 %v256, %v261
      %v277 = vadd.f32 %v257, %v261
      %v278 = vadd.f32 %v258, %v261
      %v279 = vld [vmem:[%s215] sm:$0xff]
      %v280 = vld [vmem:[%s215 + $0x8] sm:$0xff]
      %v281 = vld [vmem:[%s215 + $0x10] sm:$0xff]
      %v282 = vld [vmem:[%s215 + $0x18] sm:$0xff]
      %v283 = vld [vmem:[%s215 + $0x20] sm:$0xff]
      %v284 = vld [vmem:[%s215 + $0x28] sm:$0xff]
      %v285 = vld [vmem:[%s215 + $0x30] sm:$0xff]
      %v286 = vld [vmem:[%s215 + $0x38] sm:$0xff]
      %v287 = vld [vmem:[%s215 + $0x40] sm:$0xff]
      %v288 = vld [vmem:[%s215 + $0x48] sm:$0xff]
      %v289 = vld [vmem:[%s215 + $0x50] sm:$0xff]
      %v290 = vld [vmem:[%s215 + $0x58] sm:$0xff]
      %v291 = vld [vmem:[%s215 + $0x60] sm:$0xff]
      %v292 = vld [vmem:[%s215 + $0x68] sm:$0xff]
      %v293 = vld [vmem:[%s215 + $0x70] sm:$0xff]
      %v294 = vld [vmem:[%s215 + $0x78] sm:$0xff]
      %vm295 = vcmask 31744
      %v296 = vsel %vm295, %v279, 0.0
      %v297 = vsel %vm295, %v280, 0.0
      %v298 = vsel %vm295, %v281, 0.0
      %v299 = vsel %vm295, %v282, 0.0
      %v300 = vsel %vm295, %v283, 0.0
      %v301 = vsel %vm295, %v284, 0.0
      %v302 = vsel %vm295, %v285, 0.0
      %v303 = vsel %vm295, %v286, 0.0
      %v304 = vsel %vm295, %v287, 0.0
      %v305 = vsel %vm295, %v288, 0.0
      %v306 = vsel %vm295, %v289, 0.0
      %v307 = vsel %vm295, %v290, 0.0
      %v308 = vsel %vm295, %v291, 0.0
      %v309 = vsel %vm295, %v292, 0.0
      %v310 = vsel %vm295, %v293, 0.0
      %v311 = vsel %vm295, %v294, 0.0
      %v312 = vadd.f32 %v263, %v296
      %v313 = vadd.f32 %v264, %v297
      %v314 = vadd.f32 %v265, %v298
      %v315 = vadd.f32 %v266, %v299
      %v316 = vadd.f32 %v267, %v300
      %v317 = vadd.f32 %v268, %v301
      %v318 = vadd.f32 %v269, %v302
      %v319 = vadd.f32 %v270, %v303
      %v320 = vadd.f32 %v271, %v304
      %v321 = vadd.f32 %v272, %v305
      %v322 = vadd.f32 %v273, %v306
      %v323 = vadd.f32 %v274, %v307
      %v324 = vadd.f32 %v275, %v308
      %v325 = vadd.f32 %v276, %v309
      %v326 = vadd.f32 %v277, %v310
      %v327 = vadd.f32 %v278, %v311
      %v328 = vmax.f32 %v312, 0.0
      %v329 = vmax.f32 %v313, 0.0
      %v330 = vmax.f32 %v314, 0.0
      %v331 = vmax.f32 %v315, 0.0
      %v332 = vmax.f32 %v316, 0.0
      %v333 = vmax.f32 %v317, 0.0
      %v334 = vmax.f32 %v318, 0.0
      %v335 = vmax.f32 %v319, 0.0
      %v336 = vmax.f32 %v320, 0.0
      %v337 = vmax.f32 %v321, 0.0
      %v338 = vmax.f32 %v322, 0.0
      %v339 = vmax.f32 %v323, 0.0
      %v340 = vmax.f32 %v324, 0.0
      %v341 = vmax.f32 %v325, 0.0
      %v342 = vmax.f32 %v326, 0.0
      %v343 = vmax.f32 %v327, 0.0
      %vm344 = vcmask 64512
      %345 = vst.msk [vmem:[%s221] sm:$0xff] %vm344, %v328
      %346 = vst.msk [vmem:[%s221 + $0x8] sm:$0xff] %vm344, %v329
      %347 = vst.msk [vmem:[%s221 + $0x10] sm:$0xff] %vm344, %v330
      %348 = vst.msk [vmem:[%s221 + $0x18] sm:$0xff] %vm344, %v331
      %349 = vst.msk [vmem:[%s221 + $0x20] sm:$0xff] %vm344, %v332
      %350 = vst.msk [vmem:[%s221 + $0x28] sm:$0xff] %vm344, %v333
      %351 = vst.msk [vmem:[%s221 + $0x30] sm:$0xff] %vm344, %v334
      %352 = vst.msk [vmem:[%s221 + $0x38] sm:$0xff] %vm344, %v335
      %353 = vst.msk [vmem:[%s221 + $0x40] sm:$0xff] %vm344, %v336
      %354 = vst.msk [vmem:[%s221 + $0x48] sm:$0xff] %vm344, %v337
      %355 = vst.msk [vmem:[%s221 + $0x50] sm:$0xff] %vm344, %v338
      %356 = vst.msk [vmem:[%s221 + $0x58] sm:$0xff] %vm344, %v339
      %357 = vst.msk [vmem:[%s221 + $0x60] sm:$0xff] %vm344, %v340
      %358 = vst.msk [vmem:[%s221 + $0x68] sm:$0xff] %vm344, %v341
      %359 = vst.msk [vmem:[%s221 + $0x70] sm:$0xff] %vm344, %v342
      %360 = vst.msk [vmem:[%s221 + $0x78] sm:$0xff] %vm344, %v343
      %s361 = smul.u32 16, %s15
      %p362 = scmp.lt.s32.totalorder %s361, 63
      %s363 = scalar_select %p362, %s361, 63
      %s364 = smul.addr %s363, 8
      %s365 = scalar_lea.vmem %s4, %s364
      // Predicated region
      $region37: #{bottleneck_forward.7} parent=35 // pred_check
        %p366 = pneg %p127
      $region38: #{bottleneck_forward.7} parent=35 // pred_check_branch
        %368 = sbr.rel (%p366) target = $region40
      $region39: #{bottleneck_forward.7} parent=35 // pred_region
        %s369 = smul.u32 16, %s15
      $region40: #{bottleneck_forward.7} parent=35 // pred_fallthru
        _
    $region36: #{bottleneck_forward.7} parent=5 // pred_fallthru
      _
    %p370 = scmp.le.s32.totalorder 2, %s10
    // Predicated region
    $region41: #{bottleneck_forward.7} parent=5 // pred_check
      %p371 = pneg %p370
    $region42: #{bottleneck_forward.7} parent=5 // pred_check_branch
      %373 = sbr.rel (%p371) target = $region44
    $region43: #{bottleneck_forward.7} parent=5 // pred_region
      %s374 = ssub.s32 %s10, 2
      // Predicated region
      $region45: #{bottleneck_forward.7} parent=43 // pred_check
        %p375 = pneg %p133
      $region46: #{bottleneck_forward.7} parent=43 // pred_check_branch
        %377 = sbr.rel (%p375) target = $region48
      $region47: #{bottleneck_forward.7} parent=43 // pred_region
        %s378 = smul.u32 16, %s16
        %p379 = scmp.lt.s32.totalorder %s378, 63
        %s380 = scalar_select %p379, %s378, 63
        %s381 = smul.addr %s380, 8
        %s382 = scalar_lea.vmem %s4, %s381
      $region48: #{bottleneck_forward.7} parent=43 // pred_fallthru
        _
    $region44: #{bottleneck_forward.7} parent=5 // pred_fallthru
      _
  $region6: #{bottleneck_forward.7} parent=0 // loop_footer
    %s14 = sadd.s32 1, %s10
  $region7: #{bottleneck_forward.7} parent=0 // loop_footer_branch
    %9 = sbr.rel target = $region3
  $region8: #{bottleneck_forward.7} parent=0 // loop_exit
    _

</llo_original>
